<compile_context>
chip_gen: v7x
topology: tpu7x:2x2x1
jax: 0.10.0
libtpu: 0.0.40
codegen_flags: <defaults>
</compile_context>

<pallas_src>
import functools

import jax
import jax.numpy as jnp
from jax.experimental import pallas as pl
from jax.experimental.pallas import tpu as pltpu


def _self_attention_kernel(seq_ref, wqkv_ref, bqkv_ref, wut_ref, bu_ref, out_ref,
                           *, k, head, batch_block, seq_len, key_block,
                           compute_dtype, approx_reciprocal):
    """One batch block per grid step; heads fused; flash softmax over key tiles.

    seq_ref:  (Bb, T, K)     input sequence block (compute_dtype)
    wqkv_ref: (K, 3*H*K)     [Wq | Wk | Wv]^T, q/k parts pre-scaled by k**-0.25
    bqkv_ref: (1, 3*H*K)     [bq | bk | bv], q/k parts pre-scaled (float32)
    wut_ref:  (H*K, K)       unifyHeads weight, transposed (compute_dtype)
    bu_ref:   (1, K)         unifyHeads bias (float32)
    out_ref:  (Bb, T, K)     output block (float32)
    """
    hk = head * k
    bb, t = batch_block, seq_len
    n_key_tiles = t // key_block

    seq2d = seq_ref[...].reshape(bb * t, k)

    # Single wide QKV projection: (Bb*T, K) @ (K, 3*H*K) -> f32 accumulate.
    qkv = jnp.dot(seq2d, wqkv_ref[...],
                  preferred_element_type=jnp.float32) + bqkv_ref[...]

    # Hoisted casts: three 128-lane-aligned group casts (not 3*H per-head casts).
    q_all = qkv[:, :hk].astype(compute_dtype).reshape(bb, t, hk)
    k_all = qkv[:, hk:2 * hk].astype(compute_dtype).reshape(bb, t, hk)
    v_all = qkv[:, 2 * hk:].astype(compute_dtype).reshape(bb, t, hk)

    # Unify-heads accumulator, f32; bias added once at the end.
    out_acc = jnp.zeros((bb * t, k), jnp.float32)

    # H is small and compile-time; static unroll keeps LLO scheduling visibility.
    for h in range(head):
        sl = slice(h * k, (h + 1) * k)
        qh = q_all[..., sl]                                       # (Bb, T, K)
        kh = k_all[..., sl]
        vh = v_all[..., sl]

        # Online-softmax (flash) over key tiles — never materializes (T, T).
        m = jnp.full((bb, t, 1), -jnp.inf, jnp.float32)
        l = jnp.zeros((bb, t, 1), jnp.float32)
        acc = jnp.zeros((bb, t, k), jnp.float32)
        for j in range(n_key_tiles):
            ks = slice(j * key_block, (j + 1) * key_block)
            k_tile = kh[:, ks, :]                                 # (Bb, Tk, K)
            v_tile = vh[:, ks, :]
            # q @ k^T contracting last dims — no in-kernel transpose.
            s = jnp.einsum("bqd,bkd->bqk", qh, k_tile,
                           preferred_element_type=jnp.float32)    # (Bb, T, Tk)
            m_new = jnp.maximum(m, jnp.max(s, axis=-1, keepdims=True))
            alpha = jnp.exp(m - m_new)
            p = jnp.exp(s - m_new)
            l = alpha * l + jnp.sum(p, axis=-1, keepdims=True)
            acc = alpha * acc + jnp.einsum("bqk,bkd->bqd",
                                           p.astype(compute_dtype), v_tile,
                                           preferred_element_type=jnp.float32)
            m = m_new

        head_out = acc * pl.reciprocal(l, approx=approx_reciprocal)   # (Bb, T, K) f32

        # Per-head accumulation into the unify output (no concatenate; head_out
        # dies right after this matmul — bounded live ranges).
        wut_h = wut_ref[h * k:(h + 1) * k, :]                         # (K, K)
        out_acc = out_acc + jnp.dot(
            head_out.reshape(bb * t, k).astype(compute_dtype), wut_h,
            preferred_element_type=jnp.float32)

    out_ref[...] = (out_acc + bu_ref[...]).reshape(bb, t, k)


def self_attention(sequence, params, *, head, matmul_dtype=jnp.float32,
                   approx_reciprocal=False, batch_block=None, key_block=None):
    """sequence: (B, T, K) float32; params: dict of PyTorch-convention weights.

    Production settings (all of v5e/v6e/v7x): matmul_dtype=jnp.bfloat16 and
    approx_reciprocal=True. The defaults keep exact f32 parity for the demo assert.
    """
    b, t, k = sequence.shape
    hk = head * k

    # Batch block: amortize per-grid-step overhead at small T*K while keeping
    # >=2 grid steps so the "parallel" axis can feed both v7x TensorCores.
    if batch_block is None:
        batch_block = 1
        for d in range(b, 0, -1):
            if b % d == 0 and b // d >= 2:
                batch_block = d
                break
    assert b % batch_block == 0, "batch_block must divide batch size"

    # Key tile for the flash inner loop (full T at demo scale -> single exact pass).
    if key_block is None:
        key_block = 512 if t % 512 == 0 else t
    assert t % key_block == 0, "key_block must divide sequence length"

    # Fold the 1/k**0.25 scaling of q and k into the projection weights/biases.
    scale = 1.0 / (k ** 0.25)
    wq = params["wq"] * scale
    bq = params["bq"] * scale
    wk = params["wk"] * scale
    bk = params["bk"] * scale
    wv, bv = params["wv"], params["bv"]

    # Fused, pre-transposed QKV weight (K, 3*H*K) and fused bias (1, 3*H*K).
    wqkv_t = jnp.concatenate([wq, wk, wv], axis=0).T.astype(matmul_dtype)
    bqkv = jnp.concatenate([bq, bk, bv], axis=0).reshape(1, 3 * hk).astype(jnp.float32)

    # Pre-transposed unifyHeads weight (H*K, K) and bias (1, K).
    wut = params["wu"].T.astype(matmul_dtype)
    bu = params["bu"].reshape(1, k).astype(jnp.float32)

    seq = sequence.astype(matmul_dtype)

    # Explicit scoped-VMEM budget from the actual working set (default scoped limit
    # is well below physical on v5e/v6e); clamped to 64 MiB so it fits v7x physical.
    mb = jnp.dtype(matmul_dtype).itemsize
    f32b = 4
    bbt = batch_block * t
    vmem_est = (
        2 * bbt * k * mb                            # double-buffered input tiles
        + 2 * bbt * k * f32b                        # double-buffered output tiles
        + 2 * (k * 3 * hk + hk * k) * mb            # resident weights (pipelined 2x)
        + 2 * (3 * hk + k) * f32b                   # biases
        + bbt * 3 * hk * (f32b + mb)                # qkv f32 + compute-dtype copies
        + bbt * (key_block * (f32b + mb)            # score tile + p cast
                 + 2 * k * f32b                     # flash acc + head_out
                 + 2 * f32b)                        # running m, l
        + bbt * k * f32b                            # unify accumulator
    )
    vmem_limit = min(max(int(vmem_est * 1.5), 32 * 1024 * 1024), 64 * 1024 * 1024)

    kernel = functools.partial(
        _self_attention_kernel, k=k, head=head, batch_block=batch_block,
        seq_len=t, key_block=key_block, compute_dtype=matmul_dtype,
        approx_reciprocal=approx_reciprocal)

    return pl.pallas_call(
        kernel,
        out_shape=jax.ShapeDtypeStruct((b, t, k), jnp.float32),
        grid_spec=pltpu.PrefetchScalarGridSpec(
            num_scalar_prefetch=0,
            grid=(b // batch_block,),
            in_specs=[
                pl.BlockSpec((batch_block, t, k), lambda i: (i, 0, 0)),   # sequence block
                pl.BlockSpec((k, 3 * hk), lambda i: (0, 0)),              # fused QKV W^T
                pl.BlockSpec((1, 3 * hk), lambda i: (0, 0)),              # fused QKV bias
                pl.BlockSpec((hk, k), lambda i: (0, 0)),                  # unifyHeads W^T
                pl.BlockSpec((1, k), lambda i: (0, 0)),                   # unifyHeads bias
            ],
            out_specs=pl.BlockSpec((batch_block, t, k), lambda i: (i, 0, 0)),
        ),
        compiler_params=pltpu.CompilerParams(
            dimension_semantics=("parallel",),          # batch axis -> v7x megacore
            vmem_limit_bytes=vmem_limit),
    )(seq, wqkv_t, bqkv, wut, bu)


def _reference(sequence, params, *, head):
    """Pure-JAX reference mirroring the PyTorch forward exactly."""
    b, t, k = sequence.shape
    h = head

    def linear(x, w, bias):
        return jnp.einsum("btk,ok->bto", x, w) + bias

    q = linear(sequence, params["wq"], params["bq"])
    ky = linear(sequence, params["wk"], params["bk"])
    v = linear(sequence, params["wv"], params["bv"])

    def split(x):
        return x.reshape(b, t, h, k).transpose(0, 2, 1, 3).reshape(b * h, t, k)

    q_ = split(q) / k ** 0.25
    k_ = split(ky) / k ** 0.25
    v_ = split(v)

    raw = jnp.einsum("ntk,nsk->nts", q_, k_)
    probs = jax.nn.softmax(raw, axis=2)
    vp = jnp.einsum("nts,nsk->ntk", probs, v_).reshape(b, h, t, k)
    vp = vp.transpose(0, 2, 1, 3).reshape(b, t, h * k)
    return jnp.einsum("bto,ko->btk", vp, params["wu"]) + params["bu"]


def _init_params(key, k, head):
    hk = head * k
    keys = jax.random.split(key, 8)
    scale_in = 1.0 / jnp.sqrt(k)
    scale_hk = 1.0 / jnp.sqrt(hk)
    return {
        "wq": jax.random.normal(keys[0], (hk, k), jnp.float32) * scale_in,
        "bq": jax.random.normal(keys[1], (hk,), jnp.float32) * 0.1,
        "wk": jax.random.normal(keys[2], (hk, k), jnp.float32) * scale_in,
        "bk": jax.random.normal(keys[3], (hk,), jnp.float32) * 0.1,
        "wv": jax.random.normal(keys[4], (hk, k), jnp.float32) * scale_in,
        "bv": jax.random.normal(keys[5], (hk,), jnp.float32) * 0.1,
        "wu": jax.random.normal(keys[6], (k, hk), jnp.float32) * scale_hk,
        "bu": jax.random.normal(keys[7], (k,), jnp.float32) * 0.1,
    }


if __name__ == "__main__":
    B, T, K, HEAD = 2, 8, 32, 4

    root = jax.random.PRNGKey(0)
    pkey, xkey = jax.random.split(root)
    params = _init_params(pkey, K, HEAD)
    x = jax.random.normal(xkey, (B, T, K), jnp.float32)

    out = self_attention(x, params, head=HEAD)
    out = jax.block_until_ready(out)

    ref = _reference(x, params, head=HEAD)
    assert out.shape == (B, T, K)
    assert jnp.allclose(out, ref, atol=1e-4, rtol=1e-4), (
        f"max abs err {jnp.max(jnp.abs(out - ref))}")

    print("KERNEL_OK")
</pallas_src>

<mosaic_0001>
module attributes {stable_mosaic.version = 11 : i64} {
  func.func @_self_attention_kernel(%arg0: i32, %arg1: memref<1x8x32xf32, #tpu.memory_space<vmem>>, %arg2: memref<32x384xf32, #tpu.memory_space<vmem>>, %arg3: memref<1x384xf32, #tpu.memory_space<vmem>>, %arg4: memref<128x32xf32, #tpu.memory_space<vmem>>, %arg5: memref<1x32xf32, #tpu.memory_space<vmem>>, %arg6: memref<1x8x32xf32, #tpu.memory_space<vmem>>) attributes {dimension_semantics = [#tpu.dimension_semantics<parallel>], iteration_bounds = array<i64: 2>, scalar_prefetch = 0 : i64, scratch_operands = 0 : i64, tpu.core_type = #tpu.core_type<tc>, window_params = [{transform_indices = @transform_0, window_bounds = array<i64: 1, 8, 32>}, {pipeline_mode = #tpu.pipeline_mode<synchronous>, transform_indices = @transform_1, window_bounds = array<i64: 32, 384>}, {pipeline_mode = #tpu.pipeline_mode<synchronous>, transform_indices = @transform_2, window_bounds = array<i64: 1, 384>}, {pipeline_mode = #tpu.pipeline_mode<synchronous>, transform_indices = @transform_3, window_bounds = array<i64: 128, 32>}, {pipeline_mode = #tpu.pipeline_mode<synchronous>, transform_indices = @transform_4, window_bounds = array<i64: 1, 32>}, {transform_indices = @transform_5, window_bounds = array<i64: 1, 8, 32>}]} {
    %c0 = arith.constant 0 : index
    %c0_0 = arith.constant 0 : index
    %c0_1 = arith.constant 0 : index
    %0 = vector.load %arg1[%c0, %c0_0, %c0_1] : memref<1x8x32xf32, #tpu.memory_space<vmem>>, vector<1x8x32xf32>
    %1 = vector.shape_cast %0 : vector<1x8x32xf32> to vector<8x32xf32>
    %c0_2 = arith.constant 0 : index
    %c0_3 = arith.constant 0 : index
    %2 = vector.load %arg2[%c0_2, %c0_3] : memref<32x384xf32, #tpu.memory_space<vmem>>, vector<32x384xf32>
    %cst = arith.constant dense<0.000000e+00> : vector<8x384xf32>
    %3 = tpu.matmul %1, %2, %cst {dimension_numbers = #tpu.dot_dimension_numbers<[1], [0], [0], [1], [0, 0, 1, 1], [], []>} : vector<8x32xf32>, vector<32x384xf32>, vector<8x384xf32> -> vector<8x384xf32>
    %c0_4 = arith.constant 0 : index
    %c0_5 = arith.constant 0 : index
    %4 = vector.load %arg3[%c0_4, %c0_5] : memref<1x384xf32, #tpu.memory_space<vmem>>, vector<1x384xf32>
    %5 = vector.broadcast %4 : vector<1x384xf32> to vector<8x384xf32>
    %6 = arith.addf %3, %5 : vector<8x384xf32>
    %7 = vector.extract_strided_slice %6 {offsets = [0, 0], sizes = [8, 128], strides = [1, 1]} : vector<8x384xf32> to vector<8x128xf32>
    %8 = vector.shape_cast %7 : vector<8x128xf32> to vector<1x8x128xf32>
    %9 = vector.extract_strided_slice %6 {offsets = [0, 128], sizes = [8, 128], strides = [1, 1]} : vector<8x384xf32> to vector<8x128xf32>
    %10 = vector.shape_cast %9 : vector<8x128xf32> to vector<1x8x128xf32>
    %11 = vector.extract_strided_slice %6 {offsets = [0, 256], sizes = [8, 128], strides = [1, 1]} : vector<8x384xf32> to vector<8x128xf32>
    %12 = vector.shape_cast %11 : vector<8x128xf32> to vector<1x8x128xf32>
    %cst_6 = arith.constant 0.000000e+00 : f32
    %13 = vector.broadcast %cst_6 : f32 to vector<8x32xf32>
    %14 = vector.extract_strided_slice %8 {offsets = [0, 0, 0], sizes = [1, 8, 32], strides = [1, 1, 1]} : vector<1x8x128xf32> to vector<1x8x32xf32>
    %15 = vector.extract_strided_slice %10 {offsets = [0, 0, 0], sizes = [1, 8, 32], strides = [1, 1, 1]} : vector<1x8x128xf32> to vector<1x8x32xf32>
    %16 = vector.extract_strided_slice %12 {offsets = [0, 0, 0], sizes = [1, 8, 32], strides = [1, 1, 1]} : vector<1x8x128xf32> to vector<1x8x32xf32>
    %cst_7 = arith.constant 0xFF800000 : f32
    %17 = vector.broadcast %cst_7 : f32 to vector<1x8x1xf32>
    %cst_8 = arith.constant 0.000000e+00 : f32
    %18 = vector.broadcast %cst_8 : f32 to vector<1x8x1xf32>
    %cst_9 = arith.constant 0.000000e+00 : f32
    %19 = vector.broadcast %cst_9 : f32 to vector<1x8x32xf32>
    "tpu.trace_start"() <{level = 10 : i32, message = "bqd,bkd->bqk"}> : () -> ()
    %cst_10 = arith.constant dense<0.000000e+00> : vector<1x8x8xf32>
    %20 = tpu.matmul %14, %15, %cst_10 {dimension_numbers = #tpu.dot_dimension_numbers<[2], [2], [1], [1], [0, 0, 0, 1, 1, 1], [0], [0]>} : vector<1x8x32xf32>, vector<1x8x32xf32>, vector<1x8x8xf32> -> vector<1x8x8xf32>
    "tpu.trace_stop"() : () -> ()
    %cst_11 = arith.constant dense<0xFF800000> : vector<1x8xf32>
    %21 = vector.multi_reduction <maximumf>, %20, %cst_11 [2] : vector<1x8x8xf32> to vector<1x8xf32>
    %22 = vector.shape_cast %21 : vector<1x8xf32> to vector<1x8x1xf32>
    %23 = arith.maximumf %17, %22 : vector<1x8x1xf32>
    %24 = arith.subf %17, %23 : vector<1x8x1xf32>
    %25 = math.exp %24 : vector<1x8x1xf32>
    %26 = vector.broadcast %23 : vector<1x8x1xf32> to vector<1x8x8xf32>
    %27 = arith.subf %20, %26 : vector<1x8x8xf32>
    %28 = math.exp %27 : vector<1x8x8xf32>
    %29 = arith.mulf %25, %18 : vector<1x8x1xf32>
    %cst_12 = arith.constant dense<0.000000e+00> : vector<1x8xf32>
    %30 = vector.multi_reduction <add>, %28, %cst_12 [2] : vector<1x8x8xf32> to vector<1x8xf32>
    %31 = vector.shape_cast %30 : vector<1x8xf32> to vector<1x8x1xf32>
    %32 = arith.addf %29, %31 : vector<1x8x1xf32>
    %33 = vector.broadcast %25 : vector<1x8x1xf32> to vector<1x8x32xf32>
    %34 = arith.mulf %33, %19 : vector<1x8x32xf32>
    "tpu.trace_start"() <{level = 10 : i32, message = "bqk,bkd->bqd"}> : () -> ()
    %cst_13 = arith.constant dense<0.000000e+00> : vector<1x8x32xf32>
    %35 = tpu.matmul %28, %16, %cst_13 {dimension_numbers = #tpu.dot_dimension_numbers<[2], [1], [1], [2], [0, 0, 0, 1, 1, 2], [0], [0]>} : vector<1x8x8xf32>, vector<1x8x32xf32>, vector<1x8x32xf32> -> vector<1x8x32xf32>
    "tpu.trace_stop"() : () -> ()
    %36 = arith.addf %34, %35 : vector<1x8x32xf32>
    %37 = tpu.reciprocal %32 : vector<1x8x1xf32> -> vector<1x8x1xf32>
    %38 = vector.broadcast %37 : vector<1x8x1xf32> to vector<1x8x32xf32>
    %39 = arith.mulf %36, %38 : vector<1x8x32xf32>
    %c0_14 = arith.constant 0 : index
    %c0_15 = arith.constant 0 : index
    %40 = vector.load %arg4[%c0_14, %c0_15] : memref<128x32xf32, #tpu.memory_space<vmem>>, vector<32x32xf32>
    %41 = vector.shape_cast %39 : vector<1x8x32xf32> to vector<8x32xf32>
    %cst_16 = arith.constant dense<0.000000e+00> : vector<8x32xf32>
    %42 = tpu.matmul %41, %40, %cst_16 {dimension_numbers = #tpu.dot_dimension_numbers<[1], [0], [0], [1], [0, 0, 1, 1], [], []>} : vector<8x32xf32>, vector<32x32xf32>, vector<8x32xf32> -> vector<8x32xf32>
    %43 = arith.addf %13, %42 : vector<8x32xf32>
    %44 = vector.extract_strided_slice %8 {offsets = [0, 0, 32], sizes = [1, 8, 32], strides = [1, 1, 1]} : vector<1x8x128xf32> to vector<1x8x32xf32>
    %45 = vector.extract_strided_slice %10 {offsets = [0, 0, 32], sizes = [1, 8, 32], strides = [1, 1, 1]} : vector<1x8x128xf32> to vector<1x8x32xf32>
    %46 = vector.extract_strided_slice %12 {offsets = [0, 0, 32], sizes = [1, 8, 32], strides = [1, 1, 1]} : vector<1x8x128xf32> to vector<1x8x32xf32>
    %cst_17 = arith.constant 0xFF800000 : f32
    %47 = vector.broadcast %cst_17 : f32 to vector<1x8x1xf32>
    %cst_18 = arith.constant 0.000000e+00 : f32
    %48 = vector.broadcast %cst_18 : f32 to vector<1x8x1xf32>
    %cst_19 = arith.constant 0.000000e+00 : f32
    %49 = vector.broadcast %cst_19 : f32 to vector<1x8x32xf32>
    "tpu.trace_start"() <{level = 10 : i32, message = "bqd,bkd->bqk"}> : () -> ()
    %cst_20 = arith.constant dense<0.000000e+00> : vector<1x8x8xf32>
    %50 = tpu.matmul %44, %45, %cst_20 {dimension_numbers = #tpu.dot_dimension_numbers<[2], [2], [1], [1], [0, 0, 0, 1, 1, 1], [0], [0]>} : vector<1x8x32xf32>, vector<1x8x32xf32>, vector<1x8x8xf32> -> vector<1x8x8xf32>
    "tpu.trace_stop"() : () -> ()
    %cst_21 = arith.constant dense<0xFF800000> : vector<1x8xf32>
    %51 = vector.multi_reduction <maximumf>, %50, %cst_21 [2] : vector<1x8x8xf32> to vector<1x8xf32>
    %52 = vector.shape_cast %51 : vector<1x8xf32> to vector<1x8x1xf32>
    %53 = arith.maximumf %47, %52 : vector<1x8x1xf32>
    %54 = arith.subf %47, %53 : vector<1x8x1xf32>
    %55 = math.exp %54 : vector<1x8x1xf32>
    %56 = vector.broadcast %53 : vector<1x8x1xf32> to vector<1x8x8xf32>
    %57 = arith.subf %50, %56 : vector<1x8x8xf32>
    %58 = math.exp %57 : vector<1x8x8xf32>
    %59 = arith.mulf %55, %48 : vector<1x8x1xf32>
    %cst_22 = arith.constant dense<0.000000e+00> : vector<1x8xf32>
    %60 = vector.multi_reduction <add>, %58, %cst_22 [2] : vector<1x8x8xf32> to vector<1x8xf32>
    %61 = vector.shape_cast %60 : vector<1x8xf32> to vector<1x8x1xf32>
    %62 = arith.addf %59, %61 : vector<1x8x1xf32>
    %63 = vector.broadcast %55 : vector<1x8x1xf32> to vector<1x8x32xf32>
    %64 = arith.mulf %63, %49 : vector<1x8x32xf32>
    "tpu.trace_start"() <{level = 10 : i32, message = "bqk,bkd->bqd"}> : () -> ()
    %cst_23 = arith.constant dense<0.000000e+00> : vector<1x8x32xf32>
    %65 = tpu.matmul %58, %46, %cst_23 {dimension_numbers = #tpu.dot_dimension_numbers<[2], [1], [1], [2], [0, 0, 0, 1, 1, 2], [0], [0]>} : vector<1x8x8xf32>, vector<1x8x32xf32>, vector<1x8x32xf32> -> vector<1x8x32xf32>
    "tpu.trace_stop"() : () -> ()
    %66 = arith.addf %64, %65 : vector<1x8x32xf32>
    %67 = tpu.reciprocal %62 : vector<1x8x1xf32> -> vector<1x8x1xf32>
    %68 = vector.broadcast %67 : vector<1x8x1xf32> to vector<1x8x32xf32>
    %69 = arith.mulf %66, %68 : vector<1x8x32xf32>
    %c32 = arith.constant 32 : index
    %c0_24 = arith.constant 0 : index
    %70 = vector.load %arg4[%c32, %c0_24] : memref<128x32xf32, #tpu.memory_space<vmem>>, vector<32x32xf32>
    %71 = vector.shape_cast %69 : vector<1x8x32xf32> to vector<8x32xf32>
    %cst_25 = arith.constant dense<0.000000e+00> : vector<8x32xf32>
    %72 = tpu.matmul %71, %70, %cst_25 {dimension_numbers = #tpu.dot_dimension_numbers<[1], [0], [0], [1], [0, 0, 1, 1], [], []>} : vector<8x32xf32>, vector<32x32xf32>, vector<8x32xf32> -> vector<8x32xf32>
    %73 = arith.addf %43, %72 : vector<8x32xf32>
    %74 = vector.extract_strided_slice %8 {offsets = [0, 0, 64], sizes = [1, 8, 32], strides = [1, 1, 1]} : vector<1x8x128xf32> to vector<1x8x32xf32>
    %75 = vector.extract_strided_slice %10 {offsets = [0, 0, 64], sizes = [1, 8, 32], strides = [1, 1, 1]} : vector<1x8x128xf32> to vector<1x8x32xf32>
    %76 = vector.extract_strided_slice %12 {offsets = [0, 0, 64], sizes = [1, 8, 32], strides = [1, 1, 1]} : vector<1x8x128xf32> to vector<1x8x32xf32>
    %cst_26 = arith.constant 0xFF800000 : f32
    %77 = vector.broadcast %cst_26 : f32 to vector<1x8x1xf32>
    %cst_27 = arith.constant 0.000000e+00 : f32
    %78 = vector.broadcast %cst_27 : f32 to vector<1x8x1xf32>
    %cst_28 = arith.constant 0.000000e+00 : f32
    %79 = vector.broadcast %cst_28 : f32 to vector<1x8x32xf32>
    "tpu.trace_start"() <{level = 10 : i32, message = "bqd,bkd->bqk"}> : () -> ()
    %cst_29 = arith.constant dense<0.000000e+00> : vector<1x8x8xf32>
    %80 = tpu.matmul %74, %75, %cst_29 {dimension_numbers = #tpu.dot_dimension_numbers<[2], [2], [1], [1], [0, 0, 0, 1, 1, 1], [0], [0]>} : vector<1x8x32xf32>, vector<1x8x32xf32>, vector<1x8x8xf32> -> vector<1x8x8xf32>
    "tpu.trace_stop"() : () -> ()
    %cst_30 = arith.constant dense<0xFF800000> : vector<1x8xf32>
    %81 = vector.multi_reduction <maximumf>, %80, %cst_30 [2] : vector<1x8x8xf32> to vector<1x8xf32>
    %82 = vector.shape_cast %81 : vector<1x8xf32> to vector<1x8x1xf32>
    %83 = arith.maximumf %77, %82 : vector<1x8x1xf32>
    %84 = arith.subf %77, %83 : vector<1x8x1xf32>
    %85 = math.exp %84 : vector<1x8x1xf32>
    %86 = vector.broadcast %83 : vector<1x8x1xf32> to vector<1x8x8xf32>
    %87 = arith.subf %80, %86 : vector<1x8x8xf32>
    %88 = math.exp %87 : vector<1x8x8xf32>
    %89 = arith.mulf %85, %78 : vector<1x8x1xf32>
    %cst_31 = arith.constant dense<0.000000e+00> : vector<1x8xf32>
    %90 = vector.multi_reduction <add>, %88, %cst_31 [2] : vector<1x8x8xf32> to vector<1x8xf32>
    %91 = vector.shape_cast %90 : vector<1x8xf32> to vector<1x8x1xf32>
    %92 = arith.addf %89, %91 : vector<1x8x1xf32>
    %93 = vector.broadcast %85 : vector<1x8x1xf32> to vector<1x8x32xf32>
    %94 = arith.mulf %93, %79 : vector<1x8x32xf32>
    "tpu.trace_start"() <{level = 10 : i32, message = "bqk,bkd->bqd"}> : () -> ()
    %cst_32 = arith.constant dense<0.000000e+00> : vector<1x8x32xf32>
    %95 = tpu.matmul %88, %76, %cst_32 {dimension_numbers = #tpu.dot_dimension_numbers<[2], [1], [1], [2], [0, 0, 0, 1, 1, 2], [0], [0]>} : vector<1x8x8xf32>, vector<1x8x32xf32>, vector<1x8x32xf32> -> vector<1x8x32xf32>
    "tpu.trace_stop"() : () -> ()
    %96 = arith.addf %94, %95 : vector<1x8x32xf32>
    %97 = tpu.reciprocal %92 : vector<1x8x1xf32> -> vector<1x8x1xf32>
    %98 = vector.broadcast %97 : vector<1x8x1xf32> to vector<1x8x32xf32>
    %99 = arith.mulf %96, %98 : vector<1x8x32xf32>
    %c64 = arith.constant 64 : index
    %c0_33 = arith.constant 0 : index
    %100 = vector.load %arg4[%c64, %c0_33] : memref<128x32xf32, #tpu.memory_space<vmem>>, vector<32x32xf32>
    %101 = vector.shape_cast %99 : vector<1x8x32xf32> to vector<8x32xf32>
    %cst_34 = arith.constant dense<0.000000e+00> : vector<8x32xf32>
    %102 = tpu.matmul %101, %100, %cst_34 {dimension_numbers = #tpu.dot_dimension_numbers<[1], [0], [0], [1], [0, 0, 1, 1], [], []>} : vector<8x32xf32>, vector<32x32xf32>, vector<8x32xf32> -> vector<8x32xf32>
    %103 = arith.addf %73, %102 : vector<8x32xf32>
    %104 = vector.extract_strided_slice %8 {offsets = [0, 0, 96], sizes = [1, 8, 32], strides = [1, 1, 1]} : vector<1x8x128xf32> to vector<1x8x32xf32>
    %105 = vector.extract_strided_slice %10 {offsets = [0, 0, 96], sizes = [1, 8, 32], strides = [1, 1, 1]} : vector<1x8x128xf32> to vector<1x8x32xf32>
    %106 = vector.extract_strided_slice %12 {offsets = [0, 0, 96], sizes = [1, 8, 32], strides = [1, 1, 1]} : vector<1x8x128xf32> to vector<1x8x32xf32>
    %cst_35 = arith.constant 0xFF800000 : f32
    %107 = vector.broadcast %cst_35 : f32 to vector<1x8x1xf32>
    %cst_36 = arith.constant 0.000000e+00 : f32
    %108 = vector.broadcast %cst_36 : f32 to vector<1x8x1xf32>
    %cst_37 = arith.constant 0.000000e+00 : f32
    %109 = vector.broadcast %cst_37 : f32 to vector<1x8x32xf32>
    "tpu.trace_start"() <{level = 10 : i32, message = "bqd,bkd->bqk"}> : () -> ()
    %cst_38 = arith.constant dense<0.000000e+00> : vector<1x8x8xf32>
    %110 = tpu.matmul %104, %105, %cst_38 {dimension_numbers = #tpu.dot_dimension_numbers<[2], [2], [1], [1], [0, 0, 0, 1, 1, 1], [0], [0]>} : vector<1x8x32xf32>, vector<1x8x32xf32>, vector<1x8x8xf32> -> vector<1x8x8xf32>
    "tpu.trace_stop"() : () -> ()
    %cst_39 = arith.constant dense<0xFF800000> : vector<1x8xf32>
    %111 = vector.multi_reduction <maximumf>, %110, %cst_39 [2] : vector<1x8x8xf32> to vector<1x8xf32>
    %112 = vector.shape_cast %111 : vector<1x8xf32> to vector<1x8x1xf32>
    %113 = arith.maximumf %107, %112 : vector<1x8x1xf32>
    %114 = arith.subf %107, %113 : vector<1x8x1xf32>
    %115 = math.exp %114 : vector<1x8x1xf32>
    %116 = vector.broadcast %113 : vector<1x8x1xf32> to vector<1x8x8xf32>
    %117 = arith.subf %110, %116 : vector<1x8x8xf32>
    %118 = math.exp %117 : vector<1x8x8xf32>
    %119 = arith.mulf %115, %108 : vector<1x8x1xf32>
    %cst_40 = arith.constant dense<0.000000e+00> : vector<1x8xf32>
    %120 = vector.multi_reduction <add>, %118, %cst_40 [2] : vector<1x8x8xf32> to vector<1x8xf32>
    %121 = vector.shape_cast %120 : vector<1x8xf32> to vector<1x8x1xf32>
    %122 = arith.addf %119, %121 : vector<1x8x1xf32>
    %123 = vector.broadcast %115 : vector<1x8x1xf32> to vector<1x8x32xf32>
    %124 = arith.mulf %123, %109 : vector<1x8x32xf32>
    "tpu.trace_start"() <{level = 10 : i32, message = "bqk,bkd->bqd"}> : () -> ()
    %cst_41 = arith.constant dense<0.000000e+00> : vector<1x8x32xf32>
    %125 = tpu.matmul %118, %106, %cst_41 {dimension_numbers = #tpu.dot_dimension_numbers<[2], [1], [1], [2], [0, 0, 0, 1, 1, 2], [0], [0]>} : vector<1x8x8xf32>, vector<1x8x32xf32>, vector<1x8x32xf32> -> vector<1x8x32xf32>
    "tpu.trace_stop"() : () -> ()
    %126 = arith.addf %124, %125 : vector<1x8x32xf32>
    %127 = tpu.reciprocal %122 : vector<1x8x1xf32> -> vector<1x8x1xf32>
    %128 = vector.broadcast %127 : vector<1x8x1xf32> to vector<1x8x32xf32>
    %129 = arith.mulf %126, %128 : vector<1x8x32xf32>
    %c96 = arith.constant 96 : index
    %c0_42 = arith.constant 0 : index
    %130 = vector.load %arg4[%c96, %c0_42] : memref<128x32xf32, #tpu.memory_space<vmem>>, vector<32x32xf32>
    %131 = vector.shape_cast %129 : vector<1x8x32xf32> to vector<8x32xf32>
    %cst_43 = arith.constant dense<0.000000e+00> : vector<8x32xf32>
    %132 = tpu.matmul %131, %130, %cst_43 {dimension_numbers = #tpu.dot_dimension_numbers<[1], [0], [0], [1], [0, 0, 1, 1], [], []>} : vector<8x32xf32>, vector<32x32xf32>, vector<8x32xf32> -> vector<8x32xf32>
    %133 = arith.addf %103, %132 : vector<8x32xf32>
    %c0_44 = arith.constant 0 : index
    %c0_45 = arith.constant 0 : index
    %134 = vector.load %arg5[%c0_44, %c0_45] : memref<1x32xf32, #tpu.memory_space<vmem>>, vector<1x32xf32>
    %135 = vector.broadcast %134 : vector<1x32xf32> to vector<8x32xf32>
    %136 = arith.addf %133, %135 : vector<8x32xf32>
    %137 = vector.shape_cast %136 : vector<8x32xf32> to vector<1x8x32xf32>
    %c0_46 = arith.constant 0 : index
    %c0_47 = arith.constant 0 : index
    %c0_48 = arith.constant 0 : index
    %138 = vector.load %arg6[%c0_46, %c0_47, %c0_48] : memref<1x8x32xf32, #tpu.memory_space<vmem>>, vector<1x8x32xf32>
    tpu.vector_store %arg6[%c0_46, %c0_47, %c0_48], %137 {strides = array<i32>} : memref<1x8x32xf32, #tpu.memory_space<vmem>>, vector<1x8x32xf32>,
    return
  }
  func.func @transform_0(%arg0: i32) -> (i32, i32, i32) {
    %c0_i32 = arith.constant 0 : i32
    %c0_i32_0 = arith.constant 0 : i32
    %c0_i32_1 = arith.constant 0 : i32
    return %arg0, %c0_i32, %c0_i32_0 : i32, i32, i32
  }
  func.func @transform_1(%arg0: i32) -> (i32, i32) {
    %c0_i32 = arith.constant 0 : i32
    %c0_i32_0 = arith.constant 0 : i32
    %c0_i32_1 = arith.constant 0 : i32
    return %c0_i32, %c0_i32_0 : i32, i32
  }
  func.func @transform_2(%arg0: i32) -> (i32, i32) {
    %c0_i32 = arith.constant 0 : i32
    %c0_i32_0 = arith.constant 0 : i32
    %c0_i32_1 = arith.constant 0 : i32
    return %c0_i32, %c0_i32_0 : i32, i32
  }
  func.func @transform_3(%arg0: i32) -> (i32, i32) {
    %c0_i32 = arith.constant 0 : i32
    %c0_i32_0 = arith.constant 0 : i32
    %c0_i32_1 = arith.constant 0 : i32
    return %c0_i32, %c0_i32_0 : i32, i32
  }
  func.func @transform_4(%arg0: i32) -> (i32, i32) {
    %c0_i32 = arith.constant 0 : i32
    %c0_i32_0 = arith.constant 0 : i32
    %c0_i32_1 = arith.constant 0 : i32
    return %c0_i32, %c0_i32_0 : i32, i32
  }
  func.func @transform_5(%arg0: i32) -> (i32, i32, i32) {
    %c0_i32 = arith.constant 0 : i32
    %c0_i32_0 = arith.constant 0 : i32
    %c0_i32_1 = arith.constant 0 : i32
    return %arg0, %c0_i32, %c0_i32_0 : i32, i32, i32
  }
}

</mosaic_0001>

<llo_original>
// kernel: tpu_custom_call.1
$region0: #{tpu_custom_call.1}
  #allocation0 [shape = 'u32[]', space=smem, size = 0x4, offset = 0x4, fixed_abs, tag = 'smem constant byte address 0x4 - core index']
  #allocation1 [shape = 'u32[144,128]{1,0:T(1,128)}', space=vmem, size = 0x12000, scoped, tag = 'internal scratch']
  %s0 = inlined_call_operand.vmem [shape: f32[2,8,32], index: 0, kind: input, shape index: {}]
  %s1 = inlined_call_operand.vmem [shape: f32[32,384], index: 1, kind: input, shape index: {}]
  %s2 = inlined_call_operand.vmem [shape: f32[1,384], index: 2, kind: input, shape index: {}]
  %s3 = inlined_call_operand.vmem [shape: f32[128,32], index: 3, kind: input, shape index: {}]
  %s4 = inlined_call_operand.vmem [shape: f32[1,32], index: 4, kind: input, shape index: {}]
  %s5 = inlined_call_operand.hbm [shape: f32[2,8,32], index: 5, kind: output, shape index: {}]
  %s6 = sld [smem:[#allocation0]]
  $region53: #{tpu_custom_call.1} parent=0
    _
  %s8 = ssub.s32 1, %s6
  %s9 = scalar_select 0, %s8, %s6
  $region1: #{tpu_custom_call.1} parent=0
    #allocation2 [shape = 'u8[8192]{0}', space=vmem, size = 0x2000, scoped, tag = 'output window, operand 0']
    #allocation3 [shape = 's32[2]{0}', space=sflag, size = 0x8, scoped, tag = 'scoped memory for tpu_custom_call.1']
    %10 = vsyncpa [#allocation3], 0
    %s11 = scalar_lea.sflag [#allocation3], 1
    %12 = vsyncpa %s11, 0
    loop: start=0, step=1, limit=4
    $region2: #{tpu_custom_call.1} parent=1 // loop_pre_header
      _
    $region3: #{tpu_custom_call.1} parent=1 // loop_header
      %s14 = sphi 0, %s18
      %p15 = scmp.ge.s32.totalorder %s14, 4
      %s24 = sphi 0, %s26
      %s27 = sphi 0, %s24
      %s28 = sphi 0, %s27
      %s44 = sphi 0, %s28
      %s48 = sphi 0, %s48
      %s50 = sphi 0, %s48
      %s51 = sphi 0, %s50
      %s65 = sphi 0, %s51
      %s69 = sphi 0, %s69
      %s71 = sphi 0, %s69
      %s72 = sphi 0, %s71
      %s86 = sphi 0, %s72
      %s90 = sphi 0, %s90
      %s92 = sphi 0, %s90
      %s93 = sphi 0, %s92
      %s107 = sphi 0, %s93
      %s111 = sphi 0, %s111
      %s113 = sphi 0, %s111
      %s114 = sphi 0, %s113
      %s128 = sphi 0, %s114
      %s134 = sphi 0, %s136
      %s137 = sphi 0, %s134
      %s138 = sphi 0, %s137
      %s154 = sphi 0, %s138
    $region4: #{tpu_custom_call.1} parent=1 // loop_header_branch
      %17 = sbr.rel (%p15) target = $region8
    $region5: #{tpu_custom_call.1} parent=1 // loop_body
      %s19 = ssub.s32 %s14, 1
      %s20 = ssub.s32 %s14, 2
      %s21 = sadd.s32 %s14, 1
      %s22 = ssub.s32 %s14, %s21
      %p23 = scmp.eq.s32.totalorder %s22, 0
      %s25 = sadd.s32 %s24, 1
      %s26 = scalar_select %p23, %s24, %s25
      %p29 = pneg %p23
      %p30 = scmp.eq.s32.totalorder %s14, 1
      %p31 = por %p29, %p30
      %p32 = scmp.ne.s32.totalorder %s24, %s27
      %p33 = scmp.eq.s32.totalorder %s14, 0
      %p34 = por %p32, %p33
      %p35 = scmp.ne.s32.totalorder %s24, %s27
      %p36 = scmp.eq.s32.totalorder %s19, 1
      %p37 = por %p35, %p36
      %p38 = scmp.ne.s32.totalorder %s27, %s28
      %p39 = scmp.eq.s32.totalorder %s19, 0
      %p40 = por %p38, %p39
      %p41 = scmp.ne.s32.totalorder %s27, %s28
      %p42 = scmp.eq.s32.totalorder %s20, 1
      %p43 = por %p41, %p42
      %p45 = scmp.ne.s32.totalorder %s28, %s44
      %p46 = scmp.eq.s32.totalorder %s20, 0
      %p47 = por %p45, %p46
      %s49 = sadd.s32 %s48, 1
      %p52 = scmp.eq.s32.totalorder %s14, 1
      %p53 = scmp.ne.s32.totalorder %s48, %s50
      %p54 = scmp.eq.s32.totalorder %s14, 0
      %p55 = por %p53, %p54
      %p56 = scmp.ne.s32.totalorder %s48, %s50
      %p57 = scmp.eq.s32.totalorder %s19, 1
      %p58 = por %p56, %p57
      %p59 = scmp.ne.s32.totalorder %s50, %s51
      %p60 = scmp.eq.s32.totalorder %s19, 0
      %p61 = por %p59, %p60
      %p62 = scmp.ne.s32.totalorder %s50, %s51
      %p63 = scmp.eq.s32.totalorder %s20, 1
      %p64 = por %p62, %p63
      %p66 = scmp.ne.s32.totalorder %s51, %s65
      %p67 = scmp.eq.s32.totalorder %s20, 0
      %p68 = por %p66, %p67
      %s70 = sadd.s32 %s69, 1
      %p73 = scmp.eq.s32.totalorder %s14, 1
      %p74 = scmp.ne.s32.totalorder %s69, %s71
      %p75 = scmp.eq.s32.totalorder %s14, 0
      %p76 = por %p74, %p75
      %p77 = scmp.ne.s32.totalorder %s69, %s71
      %p78 = scmp.eq.s32.totalorder %s19, 1
      %p79 = por %p77, %p78
      %p80 = scmp.ne.s32.totalorder %s71, %s72
      %p81 = scmp.eq.s32.totalorder %s19, 0
      %p82 = por %p80, %p81
      %p83 = scmp.ne.s32.totalorder %s71, %s72
      %p84 = scmp.eq.s32.totalorder %s20, 1
      %p85 = por %p83, %p84
      %p87 = scmp.ne.s32.totalorder %s72, %s86
      %p88 = scmp.eq.s32.totalorder %s20, 0
      %p89 = por %p87, %p88
      %s91 = sadd.s32 %s90, 1
      %p94 = scmp.eq.s32.totalorder %s14, 1
      %p95 = scmp.ne.s32.totalorder %s90, %s92
      %p96 = scmp.eq.s32.totalorder %s14, 0
      %p97 = por %p95, %p96
      %p98 = scmp.ne.s32.totalorder %s90, %s92
      %p99 = scmp.eq.s32.totalorder %s19, 1
      %p100 = por %p98, %p99
      %p101 = scmp.ne.s32.totalorder %s92, %s93
      %p102 = scmp.eq.s32.totalorder %s19, 0
      %p103 = por %p101, %p102
      %p104 = scmp.ne.s32.totalorder %s92, %s93
      %p105 = scmp.eq.s32.totalorder %s20, 1
      %p106 = por %p104, %p105
      %p108 = scmp.ne.s32.totalorder %s93, %s107
      %p109 = scmp.eq.s32.totalorder %s20, 0
      %p110 = por %p108, %p109
      %s112 = sadd.s32 %s111, 1
      %p115 = scmp.eq.s32.totalorder %s14, 1
      %p116 = scmp.ne.s32.totalorder %s111, %s113
      %p117 = scmp.eq.s32.totalorder %s14, 0
      %p118 = por %p116, %p117
      %p119 = scmp.ne.s32.totalorder %s111, %s113
      %p120 = scmp.eq.s32.totalorder %s19, 1
      %p121 = por %p119, %p120
      %p122 = scmp.ne.s32.totalorder %s113, %s114
      %p123 = scmp.eq.s32.totalorder %s19, 0
      %p124 = por %p122, %p123
      %p125 = scmp.ne.s32.totalorder %s113, %s114
      %p126 = scmp.eq.s32.totalorder %s20, 1
      %p127 = por %p125, %p126
      %p129 = scmp.ne.s32.totalorder %s114, %s128
      %p130 = scmp.eq.s32.totalorder %s20, 0
      %p131 = por %p129, %p130
      %s132 = ssub.s32 %s14, %s21
      %p133 = scmp.eq.s32.totalorder %s132, 0
      %s135 = sadd.s32 %s134, 1
      %s136 = scalar_select %p133, %s134, %s135
      %p139 = pneg %p133
      %p140 = scmp.eq.s32.totalorder %s14, 1
      %p141 = por %p139, %p140
      %p142 = scmp.ne.s32.totalorder %s134, %s137
      %p143 = scmp.eq.s32.totalorder %s14, 0
      %p144 = por %p142, %p143
      %p145 = scmp.ne.s32.totalorder %s134, %s137
      %p146 = scmp.eq.s32.totalorder %s19, 1
      %p147 = por %p145, %p146
      %p148 = scmp.ne.s32.totalorder %s137, %s138
      %p149 = scmp.eq.s32.totalorder %s19, 0
      %p150 = por %p148, %p149
      %p151 = scmp.ne.s32.totalorder %s137, %s138
      %p152 = scmp.eq.s32.totalorder %s20, 1
      %p153 = por %p151, %p152
      %p155 = scmp.ne.s32.totalorder %s138, %s154
      %p156 = scmp.eq.s32.totalorder %s20, 0
      %p157 = por %p155, %p156
      %p158 = scmp.le.s32.totalorder 1, %s14
      %p159 = scmp.lt.s32.totalorder %s14, 3
      %p160 = pnand %p158, %p159
      %p161 = pneg %p160
      // Predicated region
      $region9: #{tpu_custom_call.1} parent=5 // pred_check
        _
      $region10: #{tpu_custom_call.1} parent=5 // pred_check_branch
        %163 = sbr.rel (%p160) target = $region12
      $region11: #{tpu_custom_call.1} parent=5 // pred_region
        %s164 = ssub.s32 %s14, 1
        // Predicated region
        $region13: #{tpu_custom_call.1} parent=11 // pred_check
          %p165 = pneg %p61
        $region14: #{tpu_custom_call.1} parent=11 // pred_check_branch
          %167 = sbr.rel (%p165) target = $region16
        $region15: #{tpu_custom_call.1} parent=11 // pred_region
          _
        $region16: #{tpu_custom_call.1} parent=11 // pred_fallthru
          _
        // Predicated region
        $region17: #{tpu_custom_call.1} parent=11 // pred_check
          %p168 = pneg %p82
        $region18: #{tpu_custom_call.1} parent=11 // pred_check_branch
          %170 = sbr.rel (%p168) target = $region20
        $region19: #{tpu_custom_call.1} parent=11 // pred_region
          _
        $region20: #{tpu_custom_call.1} parent=11 // pred_fallthru
          _
        // Predicated region
        $region21: #{tpu_custom_call.1} parent=11 // pred_check
          %p171 = pneg %p103
        $region22: #{tpu_custom_call.1} parent=11 // pred_check_branch
          %173 = sbr.rel (%p171) target = $region24
        $region23: #{tpu_custom_call.1} parent=11 // pred_region
          _
        $region24: #{tpu_custom_call.1} parent=11 // pred_fallthru
          _
        // Predicated region
        $region25: #{tpu_custom_call.1} parent=11 // pred_check
          %p174 = pneg %p124
        $region26: #{tpu_custom_call.1} parent=11 // pred_check_branch
          %176 = sbr.rel (%p174) target = $region28
        $region27: #{tpu_custom_call.1} parent=11 // pred_region
          _
        $region28: #{tpu_custom_call.1} parent=11 // pred_fallthru
          _
      $region12: #{tpu_custom_call.1} parent=5 // pred_fallthru
        _
      %p177 = scmp.lt.s32.totalorder %s14, 2
      // Predicated region
      $region29: #{tpu_custom_call.1} parent=5 // pred_check
        %p178 = pneg %p177
      $region30: #{tpu_custom_call.1} parent=5 // pred_check_branch
        %180 = sbr.rel (%p178) target = $region32
      $region31: #{tpu_custom_call.1} parent=5 // pred_region
        // Predicated region
        $region33: #{tpu_custom_call.1} parent=31 // pred_check
          %p181 = pneg %p34
        $region34: #{tpu_custom_call.1} parent=31 // pred_check_branch
          %183 = sbr.rel (%p181) target = $region36
        $region35: #{tpu_custom_call.1} parent=31 // pred_region
          %p184 = scmp.lt.s32.totalorder %s14, 1
          %s185 = scalar_select %p184, %s14, 1
          %s186 = smul.addr %s185, 8
          %s187 = scalar_lea.vmem %s0, %s186
        $region36: #{tpu_custom_call.1} parent=31 // pred_fallthru
          _
      $region32: #{tpu_custom_call.1} parent=5 // pred_fallthru
        _
      %p188 = scmp.le.s32.totalorder 1, %s14
      %p189 = scmp.lt.s32.totalorder %s14, 3
      %p190 = pnand %p188, %p189
      %p191 = pneg %p190
      // Predicated region
      $region37: #{tpu_custom_call.1} parent=5 // pred_check
        _
      $region38: #{tpu_custom_call.1} parent=5 // pred_check_branch
        %193 = sbr.rel (%p190) target = $region40
      $region39: #{tpu_custom_call.1} parent=5 // pred_region
        %s194 = ssub.s32 %s14, 1
        %p195 = scmp.lt.s32.totalorder %s19, 1
        %s196 = scalar_select %p195, %s19, 1
        %s197 = smul.addr %s196, 8
        %s198 = scalar_lea.vmem %s0, %s197
        %p199 = pneg %p40
        %p200 = pneg %p37
        %p201 = pneg %p61
        %p202 = pneg %p58
        %p203 = pneg %p82
        %p204 = pneg %p79
        %p205 = pneg %p103
        %p206 = pneg %p100
        %p207 = pneg %p124
        %p208 = pneg %p121
        %p209 = pneg %p150
        %p210 = pneg %p147
        %s211 = sand.u32 %s137, 1
        %s212 = scalar_lea.sflag [#allocation3], %s211
        %s213 = sand.u32 %s137, 1
        %s214 = smul.addr %s213, 8
        %s215 = scalar_lea.vmem [#allocation2], %s214
        %p216 = scmp.lt.s32.totalorder %s19, 1
        %s217 = scalar_select %p216, %s19, 1
        %s218 = smul.addr %s217, 8
        %s219 = scalar_lea.vmem %s0, %s218
        %v220 = vld [vmem:[%s219] sm:$0xff]
        %v221 = vld [vmem:[%s1] sm:$0xff]
        %v222 = vld [vmem:[%s1 + $0x8] sm:$0xff]
        %v223 = vld [vmem:[%s1 + $0x10] sm:$0xff]
        %v224 = vld [vmem:[%s1 + $0x18] sm:$0xff]
        %v225 = vld [vmem:[%s1 + $0x20] sm:$0xff]
        %v226 = vld [vmem:[%s1 + $0x28] sm:$0xff]
        %v227 = vld [vmem:[%s1 + $0x30] sm:$0xff]
        %v228 = vld [vmem:[%s1 + $0x38] sm:$0xff]
        %v229 = vld [vmem:[%s1 + $0x40] sm:$0xff]
        %v230 = vld [vmem:[%s1 + $0x48] sm:$0xff]
        %v231 = vld [vmem:[%s1 + $0x50] sm:$0xff]
        %v232 = vld [vmem:[%s1 + $0x58] sm:$0xff]
        %v233 = vld [vmem:[%s2] sm:$0x7]
        %v235 = vlaneseq
        %v236 = vshrl.u32 %v235, 7
        %v237 = vsub.s32 0, %v236
        %v238 = vrot.slane %v233, %v237
        %v239 = vlaneseq
        %v240 = vshrl.u32 %v239, 7
        %v241 = vsub.s32 1, %v240
        %v242 = vrot.slane %v233, %v241
        %v243 = vlaneseq
        %v244 = vshrl.u32 %v243, 7
        %v245 = vsub.s32 2, %v244
        %v246 = vrot.slane %v233, %v245
        %vm250 = vcmask 261120
        %v252 = vsel %vm250, %v220, 0
        %254 = vmatprep.subr.mxu0 %v222
        %255 = vmatpush1.msra.mxu0 %v221
        %256 = vmatprep.subr.mxu0 %v225
        %257 = vmatpush1.msra.mxu0 %v224
        %258 = vmatprep.subr.mxu0 %v228
        %259 = vmatpush1.msra.mxu0 %v227
        %260 = vmatprep.subr.mxu0 %v231
        %261 = vmatpush1.msra.mxu0 %v230
        %262 = vmatprep.subr.mxu0 0.0
        %263 = vmatpush1.msra.mxu0 0.0
        %264 = vmatprep.subr.mxu0 0.0
        %265 = vmatpush1.msra.mxu0 0.0
        %266 = vmatprep.subr.mxu0 0.0
        %267 = vmatpush1.msra.mxu0 0.0
        %268 = vmatprep.subr.mxu0 0.0
        %269 = vmatpush1.msra.mxu0 0.0
        %270 = vmatprep.subr.mxu0 0.0
        %271 = vmatpush1.msra.mxu0 0.0
        %272 = vmatprep.subr.mxu0 0.0
        %273 = vmatpush1.msra.mxu0 0.0
        %274 = vmatprep.subr.mxu0 0.0
        %275 = vmatpush1.msra.mxu0 0.0
        %276 = vmatprep.subr.mxu0 0.0
        %277 = vmatpush1.msra.mxu0 0.0
        %278 = vmatprep.subr.mxu0 0.0
        %279 = vmatpush1.msra.mxu0 0.0
        %280 = vmatprep.subr.mxu0 0.0
        %281 = vmatpush1.msra.mxu0 0.0
        %282 = vmatprep.subr.mxu0 0.0
        %283 = vmatpush1.msra.mxu0 0.0
        %284 = vmatprep.subr.mxu0 0.0
        %285 = vmatpush1.msra.mxu0 0.0
        %286 = vmatprep.subr.mxu0 0.0
        %287 = vmatpush1.msra.mxu0 0.0
        %288 = vmatprep.subr.mxu0 0.0
        %289 = vmatpush1.msra.mxu0 0.0
        %290 = vmatprep.subr.mxu0 0.0
        %291 = vmatpush1.msra.mxu0 0.0
        %292 = vmatprep.subr.mxu0 0.0
        %293 = vmatpush1.msra.mxu0 0.0
        %294 = vmatprep.subr.mxu0 0.0
        %295 = vmatpush1.msra.mxu0 0.0
        %296 = vmatprep.subr.mxu0 0.0
        %297 = vmatpush1.msra.mxu0 0.0
        %298 = vmatprep.subr.mxu0 0.0
        %299 = vmatpush1.msra.mxu0 0.0
        %300 = vmatprep.subr.mxu0 0.0
        %301 = vmatpush1.msra.mxu0 0.0
        %302 = vmatprep.subr.mxu0 0.0
        %303 = vmatpush1.msra.mxu0 0.0
        %304 = vmatprep.subr.mxu0 0.0
        %305 = vmatpush1.msra.mxu0 0.0
        %306 = vmatprep.subr.mxu0 0.0
        %307 = vmatpush1.msra.mxu0 0.0
        %308 = vmatprep.subr.mxu0 0.0
        %309 = vmatpush1.msra.mxu0 0.0
        %310 = vmatprep.subr.mxu0 0.0
        %311 = vmatpush1.msra.mxu0 0.0
        %312 = vmatprep.subr.mxu0 0.0
        %313 = vmatpush1.msra.mxu0 0.0
        %314 = vmatprep.subr.mxu0 0.0
        %315 = vmatpush1.msra.mxu0 0.0
        %316 = vmatprep.subr.mxu0 0.0
        %317 = vmatpush1.msra.mxu0 0.0
        %318 = vmatprep.mubr.f32.mxu0 0.0
        %319 = vmatmul.mubr.f32.gmra.mrb[0].mxu0 %v252
        %v320 = vpop.f32.mrb[0].mxu0
        %v321 = vadd.f32 %v238, %v320
        %v322 = vpop.f32.mrb[0].mxu0
        %v323 = vadd.f32 %v242, %v322
        %324 = vdwg.mxu0
        %325 = vmatprep.subr.mxu0 0.0
        %326 = vmatpush1.msra.mxu0 %v223
        %327 = vmatprep.subr.mxu0 0.0
        %328 = vmatpush1.msra.mxu0 %v226
        %329 = vmatprep.subr.mxu0 0.0
        %330 = vmatpush1.msra.mxu0 %v229
        %331 = vmatprep.subr.mxu0 0.0
        %332 = vmatpush1.msra.mxu0 %v232
        %333 = vmatprep.subr.mxu0 0.0
        %334 = vmatpush1.msra.mxu0 0.0
        %335 = vmatprep.subr.mxu0 0.0
        %336 = vmatpush1.msra.mxu0 0.0
        %337 = vmatprep.subr.mxu0 0.0
        %338 = vmatpush1.msra.mxu0 0.0
        %339 = vmatprep.subr.mxu0 0.0
        %340 = vmatpush1.msra.mxu0 0.0
        %341 = vmatprep.subr.mxu0 0.0
        %342 = vmatpush1.msra.mxu0 0.0
        %343 = vmatprep.subr.mxu0 0.0
        %344 = vmatpush1.msra.mxu0 0.0
        %345 = vmatprep.subr.mxu0 0.0
        %346 = vmatpush1.msra.mxu0 0.0
        %347 = vmatprep.subr.mxu0 0.0
        %348 = vmatpush1.msra.mxu0 0.0
        %349 = vmatprep.subr.mxu0 0.0
        %350 = vmatpush1.msra.mxu0 0.0
        %351 = vmatprep.subr.mxu0 0.0
        %352 = vmatpush1.msra.mxu0 0.0
        %353 = vmatprep.subr.mxu0 0.0
        %354 = vmatpush1.msra.mxu0 0.0
        %355 = vmatprep.subr.mxu0 0.0
        %356 = vmatpush1.msra.mxu0 0.0
        %357 = vmatprep.subr.mxu0 0.0
        %358 = vmatpush1.msra.mxu0 0.0
        %359 = vmatprep.subr.mxu0 0.0
        %360 = vmatpush1.msra.mxu0 0.0
        %361 = vmatprep.subr.mxu0 0.0
        %362 = vmatpush1.msra.mxu0 0.0
        %363 = vmatprep.subr.mxu0 0.0
        %364 = vmatpush1.msra.mxu0 0.0
        %365 = vmatprep.subr.mxu0 0.0
        %366 = vmatpush1.msra.mxu0 0.0
        %367 = vmatprep.subr.mxu0 0.0
        %368 = vmatpush1.msra.mxu0 0.0
        %369 = vmatprep.subr.mxu0 0.0
        %370 = vmatpush1.msra.mxu0 0.0
        %371 = vmatprep.subr.mxu0 0.0
        %372 = vmatpush1.msra.mxu0 0.0
        %373 = vmatprep.subr.mxu0 0.0
        %374 = vmatpush1.msra.mxu0 0.0
        %375 = vmatprep.subr.mxu0 0.0
        %376 = vmatpush1.msra.mxu0 0.0
        %377 = vmatprep.subr.mxu0 0.0
        %378 = vmatpush1.msra.mxu0 0.0
        %379 = vmatprep.subr.mxu0 0.0
        %380 = vmatpush1.msra.mxu0 0.0
        %381 = vmatprep.subr.mxu0 0.0
        %382 = vmatpush1.msra.mxu0 0.0
        %383 = vmatprep.subr.mxu0 0.0
        %384 = vmatpush1.msra.mxu0 0.0
        %385 = vmatprep.subr.mxu0 0.0
        %386 = vmatpush1.msra.mxu0 0.0
        %387 = vmatprep.subr.mxu0 0.0
        %388 = vmatpush1.msra.mxu0 0.0
        %389 = vmatprep.mubr.f32.mxu0 0.0
        %390 = vmatmul.mubr.f32.gmra.mrb[0].mxu0 %v252
        %v391 = vpop.f32.mrb[0].mxu0
        %v392 = vadd.f32 %v246, %v391
        %v393 = vpop.f32.mrb[0].mxu0
        %394 = vdwg.mxu0
        %v396 = vsel %vm250, %v321, 0
        %v399 = vsel %vm250, %v323, 0
        %401 = vmatprep.subr.mxu0 0.0
        %402 = vmatpush1.xpose.msra.mxu0 %v399
        %403 = vmatprep.subr.mxu0 0.0
        %404 = vmatpush1.xpose.msra.mxu0 0.0
        %405 = vmatprep.subr.mxu0 0.0
        %406 = vmatpush1.xpose.msra.mxu0 0.0
        %407 = vmatprep.subr.mxu0 0.0
        %408 = vmatpush1.xpose.msra.mxu0 0.0
        %409 = vmatprep.subr.mxu0 0.0
        %410 = vmatpush1.xpose.msra.mxu0 0.0
        %411 = vmatprep.subr.mxu0 0.0
        %412 = vmatpush1.xpose.msra.mxu0 0.0
        %413 = vmatprep.subr.mxu0 0.0
        %414 = vmatpush1.xpose.msra.mxu0 0.0
        %415 = vmatprep.subr.mxu0 0.0
        %416 = vmatpush1.xpose.msra.mxu0 0.0
        %417 = vmatprep.subr.mxu0 0.0
        %418 = vmatpush1.xpose.msra.mxu0 0.0
        %419 = vmatprep.subr.mxu0 0.0
        %420 = vmatpush1.xpose.msra.mxu0 0.0
        %421 = vmatprep.subr.mxu0 0.0
        %422 = vmatpush1.xpose.msra.mxu0 0.0
        %423 = vmatprep.subr.mxu0 0.0
        %424 = vmatpush1.xpose.msra.mxu0 0.0
        %425 = vmatprep.subr.mxu0 0.0
        %426 = vmatpush1.xpose.msra.mxu0 0.0
        %427 = vmatprep.subr.mxu0 0.0
        %428 = vmatpush1.xpose.msra.mxu0 0.0
        %429 = vmatprep.subr.mxu0 0.0
        %430 = vmatpush1.xpose.msra.mxu0 0.0
        %431 = vmatprep.subr.mxu0 0.0
        %432 = vmatpush1.xpose.msra.mxu0 0.0
        %433 = vmatprep.subr.mxu0 0.0
        %434 = vmatpush1.xpose.msra.mxu0 0.0
        %435 = vmatprep.subr.mxu0 0.0
        %436 = vmatpush1.xpose.msra.mxu0 0.0
        %437 = vmatprep.subr.mxu0 0.0
        %438 = vmatpush1.xpose.msra.mxu0 0.0
        %439 = vmatprep.subr.mxu0 0.0
        %440 = vmatpush1.xpose.msra.mxu0 0.0
        %441 = vmatprep.subr.mxu0 0.0
        %442 = vmatpush1.xpose.msra.mxu0 0.0
        %443 = vmatprep.subr.mxu0 0.0
        %444 = vmatpush1.xpose.msra.mxu0 0.0
        %445 = vmatprep.subr.mxu0 0.0
        %446 = vmatpush1.xpose.msra.mxu0 0.0
        %447 = vmatprep.subr.mxu0 0.0
        %448 = vmatpush1.xpose.msra.mxu0 0.0
        %449 = vmatprep.subr.mxu0 0.0
        %450 = vmatpush1.xpose.msra.mxu0 0.0
        %451 = vmatprep.subr.mxu0 0.0
        %452 = vmatpush1.xpose.msra.mxu0 0.0
        %453 = vmatprep.subr.mxu0 0.0
        %454 = vmatpush1.xpose.msra.mxu0 0.0
        %455 = vmatprep.subr.mxu0 0.0
        %456 = vmatpush1.xpose.msra.mxu0 0.0
        %457 = vmatprep.subr.mxu0 0.0
        %458 = vmatpush1.xpose.msra.mxu0 0.0
        %459 = vmatprep.subr.mxu0 0.0
        %460 = vmatpush1.xpose.msra.mxu0 0.0
        %461 = vmatprep.subr.mxu0 0.0
        %462 = vmatpush1.xpose.msra.mxu0 0.0
        %463 = vmatprep.subr.mxu0 0.0
        %464 = vmatpush1.xpose.msra.mxu0 0.0
        %465 = vmatprep.mubr.f32.mxu0 0.0
        %466 = vmatmul.mubr.f32.gmra.mrb[0].mxu0 %v396
        %v467 = vpop.f32.mrb[0].mxu0
        %v468 = vadd.f32 0.0, %v467
        %v469 = vpop.f32.mrb[0].mxu0
        %470 = vdwg.mxu0
        %vm471 = vcmask 64512
        %v472 = vsel %vm471, %v468, -inf
        %473 = vmax.xlane.f32.xlu0 %v472
        %v474 = vpop.xlane.xlu0 %473
        %v475 = vsub.f32 -inf, %v474
        %v476 = vmul.f32 %v475, 1.442695
        %v477 = vpow.pop %v476
        %v478 = vsub.f32 %v468, %v474
        %v479 = vmul.f32 %v478, 1.442695
        %v480 = vpow.pop %v479
        %v481 = vmul.f32 %v477, 0.0
        %v482 = vsel %vm471, %v480, 0.0
        %483 = vadd.xlane.f32.xlu0 %v482
        %v484 = vpop.xlane.xlu0 %483
        %v485 = vadd.f32 %v481, %v484
        %v487 = vsel %vm471, %v480, 0
        %489 = vmatprep.subr.mxu0 0.0
        %490 = vmatpush1.msra.mxu0 %v392
        %491 = vmatprep.subr.mxu0 0.0
        %492 = vmatpush1.msra.mxu0 0.0
        %493 = vmatprep.subr.mxu0 0.0
        %494 = vmatpush1.msra.mxu0 0.0
        %495 = vmatprep.subr.mxu0 0.0
        %496 = vmatpush1.msra.mxu0 0.0
        %497 = vmatprep.subr.mxu0 0.0
        %498 = vmatpush1.msra.mxu0 0.0
        %499 = vmatprep.subr.mxu0 0.0
        %500 = vmatpush1.msra.mxu0 0.0
        %501 = vmatprep.subr.mxu0 0.0
        %502 = vmatpush1.msra.mxu0 0.0
        %503 = vmatprep.subr.mxu0 0.0
        %504 = vmatpush1.msra.mxu0 0.0
        %505 = vmatprep.subr.mxu0 0.0
        %506 = vmatpush1.msra.mxu0 0.0
        %507 = vmatprep.subr.mxu0 0.0
        %508 = vmatpush1.msra.mxu0 0.0
        %509 = vmatprep.subr.mxu0 0.0
        %510 = vmatpush1.msra.mxu0 0.0
        %511 = vmatprep.subr.mxu0 0.0
        %512 = vmatpush1.msra.mxu0 0.0
        %513 = vmatprep.subr.mxu0 0.0
        %514 = vmatpush1.msra.mxu0 0.0
        %515 = vmatprep.subr.mxu0 0.0
        %516 = vmatpush1.msra.mxu0 0.0
        %517 = vmatprep.subr.mxu0 0.0
        %518 = vmatpush1.msra.mxu0 0.0
        %519 = vmatprep.subr.mxu0 0.0
        %520 = vmatpush1.msra.mxu0 0.0
        %521 = vmatprep.subr.mxu0 0.0
        %522 = vmatpush1.msra.mxu0 0.0
        %523 = vmatprep.subr.mxu0 0.0
        %524 = vmatpush1.msra.mxu0 0.0
        %525 = vmatprep.subr.mxu0 0.0
        %526 = vmatpush1.msra.mxu0 0.0
        %527 = vmatprep.subr.mxu0 0.0
        %528 = vmatpush1.msra.mxu0 0.0
        %529 = vmatprep.subr.mxu0 0.0
        %530 = vmatpush1.msra.mxu0 0.0
        %531 = vmatprep.subr.mxu0 0.0
        %532 = vmatpush1.msra.mxu0 0.0
        %533 = vmatprep.subr.mxu0 0.0
        %534 = vmatpush1.msra.mxu0 0.0
        %535 = vmatprep.subr.mxu0 0.0
        %536 = vmatpush1.msra.mxu0 0.0
        %537 = vmatprep.subr.mxu0 0.0
        %538 = vmatpush1.msra.mxu0 0.0
        %539 = vmatprep.subr.mxu0 0.0
        %540 = vmatpush1.msra.mxu0 0.0
        %541 = vmatprep.subr.mxu0 0.0
        %542 = vmatpush1.msra.mxu0 0.0
        %543 = vmatprep.subr.mxu0 0.0
        %544 = vmatpush1.msra.mxu0 0.0
        %545 = vmatprep.subr.mxu0 0.0
        %546 = vmatpush1.msra.mxu0 0.0
        %547 = vmatprep.subr.mxu0 0.0
        %548 = vmatpush1.msra.mxu0 0.0
        %549 = vmatprep.subr.mxu0 0.0
        %550 = vmatpush1.msra.mxu0 0.0
        %551 = vmatprep.subr.mxu0 0.0
        %552 = vmatpush1.msra.mxu0 0.0
        %553 = vmatprep.mubr.f32.mxu0 0.0
        %554 = vmatmul.mubr.f32.gmra.mrb[0].mxu0 %v487
        %v555 = vpop.f32.mrb[0].mxu0
        %v556 = vadd.f32 0.0, %v555
        %v557 = vpop.f32.mrb[0].mxu0
        %558 = vdwg.mxu0
        %v559 = vadd.f32 %v481, %v556
        %v560 = vrcp.pop %v485
        %v561 = vmul.f32 %v559, %v560
        %v562 = vld [vmem:[%s3] sm:$0xff]
        %v563 = vld [vmem:[%s3 + $0x8] sm:$0xff]
        %v564 = vld [vmem:[%s3 + $0x10] sm:$0xff]
        %v565 = vld [vmem:[%s3 + $0x18] sm:$0xff]
        %566 = vrot.lane.b32.xlu0 %v321, 96
        %v567 = vpop.permute.xlu0 %566
        %568 = vrot.lane.b32.xlu0 %v323, 96
        %v569 = vpop.permute.xlu0 %568
        %v570 = vsel %vm250, %v567, 0
        %v572 = vsel %vm250, %v569, 0
        %574 = vmatprep.subr.mxu0 0.0
        %575 = vmatpush1.xpose.msra.mxu0 %v572
        %576 = vmatprep.subr.mxu0 0.0
        %577 = vmatpush1.xpose.msra.mxu0 0.0
        %578 = vmatprep.subr.mxu0 0.0
        %579 = vmatpush1.xpose.msra.mxu0 0.0
        %580 = vmatprep.subr.mxu0 0.0
        %581 = vmatpush1.xpose.msra.mxu0 0.0
        %582 = vmatprep.subr.mxu0 0.0
        %583 = vmatpush1.xpose.msra.mxu0 0.0
        %584 = vmatprep.subr.mxu0 0.0
        %585 = vmatpush1.xpose.msra.mxu0 0.0
        %586 = vmatprep.subr.mxu0 0.0
        %587 = vmatpush1.xpose.msra.mxu0 0.0
        %588 = vmatprep.subr.mxu0 0.0
        %589 = vmatpush1.xpose.msra.mxu0 0.0
        %590 = vmatprep.subr.mxu0 0.0
        %591 = vmatpush1.xpose.msra.mxu0 0.0
        %592 = vmatprep.subr.mxu0 0.0
        %593 = vmatpush1.xpose.msra.mxu0 0.0
        %594 = vmatprep.subr.mxu0 0.0
        %595 = vmatpush1.xpose.msra.mxu0 0.0
        %596 = vmatprep.subr.mxu0 0.0
        %597 = vmatpush1.xpose.msra.mxu0 0.0
        %598 = vmatprep.subr.mxu0 0.0
        %599 = vmatpush1.xpose.msra.mxu0 0.0
        %600 = vmatprep.subr.mxu0 0.0
        %601 = vmatpush1.xpose.msra.mxu0 0.0
        %602 = vmatprep.subr.mxu0 0.0
        %603 = vmatpush1.xpose.msra.mxu0 0.0
        %604 = vmatprep.subr.mxu0 0.0
        %605 = vmatpush1.xpose.msra.mxu0 0.0
        %606 = vmatprep.subr.mxu0 0.0
        %607 = vmatpush1.xpose.msra.mxu0 0.0
        %608 = vmatprep.subr.mxu0 0.0
        %609 = vmatpush1.xpose.msra.mxu0 0.0
        %610 = vmatprep.subr.mxu0 0.0
        %611 = vmatpush1.xpose.msra.mxu0 0.0
        %612 = vmatprep.subr.mxu0 0.0
        %613 = vmatpush1.xpose.msra.mxu0 0.0
        %614 = vmatprep.subr.mxu0 0.0
        %615 = vmatpush1.xpose.msra.mxu0 0.0
        %616 = vmatprep.subr.mxu0 0.0
        %617 = vmatpush1.xpose.msra.mxu0 0.0
        %618 = vmatprep.subr.mxu0 0.0
        %619 = vmatpush1.xpose.msra.mxu0 0.0
        %620 = vmatprep.subr.mxu0 0.0
        %621 = vmatpush1.xpose.msra.mxu0 0.0
        %622 = vmatprep.subr.mxu0 0.0
        %623 = vmatpush1.xpose.msra.mxu0 0.0
        %624 = vmatprep.subr.mxu0 0.0
        %625 = vmatpush1.xpose.msra.mxu0 0.0
        %626 = vmatprep.subr.mxu0 0.0
        %627 = vmatpush1.xpose.msra.mxu0 0.0
        %628 = vmatprep.subr.mxu0 0.0
        %629 = vmatpush1.xpose.msra.mxu0 0.0
        %630 = vmatprep.subr.mxu0 0.0
        %631 = vmatpush1.xpose.msra.mxu0 0.0
        %632 = vmatprep.subr.mxu0 0.0
        %633 = vmatpush1.xpose.msra.mxu0 0.0
        %634 = vmatprep.subr.mxu0 0.0
        %635 = vmatpush1.xpose.msra.mxu0 0.0
        %636 = vmatprep.subr.mxu0 0.0
        %637 = vmatpush1.xpose.msra.mxu0 0.0
        %638 = vmatprep.mubr.f32.mxu0 0.0
        %639 = vmatmul.mubr.f32.gmra.mrb[0].mxu0 %v570
        %v640 = vpop.f32.mrb[0].mxu0
        %v641 = vadd.f32 0.0, %v640
        %v642 = vpop.f32.mrb[0].mxu0
        %643 = vdwg.mxu0
        %v644 = vsel %vm471, %v641, -inf
        %645 = vmax.xlane.f32.xlu0 %v644
        %v646 = vpop.xlane.xlu0 %645
        %v647 = vsub.f32 -inf, %v646
        %v648 = vmul.f32 %v647, 1.442695
        %v649 = vpow.pop %v648
        %v650 = vsub.f32 %v641, %v646
        %v651 = vmul.f32 %v650, 1.442695
        %v652 = vpow.pop %v651
        %v653 = vmul.f32 %v649, 0.0
        %v654 = vsel %vm471, %v652, 0.0
        %655 = vadd.xlane.f32.xlu0 %v654
        %v656 = vpop.xlane.xlu0 %655
        %v657 = vadd.f32 %v653, %v656
        %659 = vrot.lane.b32.xlu0 %v392, 96
        %v660 = vpop.permute.xlu0 %659
        %v663 = vsel %vm471, %v652, 0
        %665 = vmatprep.subr.mxu0 0.0
        %666 = vmatpush1.msra.mxu0 %v660
        %667 = vmatprep.subr.mxu0 0.0
        %668 = vmatpush1.msra.mxu0 0.0
        %669 = vmatprep.subr.mxu0 0.0
        %670 = vmatpush1.msra.mxu0 0.0
        %671 = vmatprep.subr.mxu0 0.0
        %672 = vmatpush1.msra.mxu0 0.0
        %673 = vmatprep.subr.mxu0 0.0
        %674 = vmatpush1.msra.mxu0 0.0
        %675 = vmatprep.subr.mxu0 0.0
        %676 = vmatpush1.msra.mxu0 0.0
        %677 = vmatprep.subr.mxu0 0.0
        %678 = vmatpush1.msra.mxu0 0.0
        %679 = vmatprep.subr.mxu0 0.0
        %680 = vmatpush1.msra.mxu0 0.0
        %681 = vmatprep.subr.mxu0 0.0
        %682 = vmatpush1.msra.mxu0 0.0
        %683 = vmatprep.subr.mxu0 0.0
        %684 = vmatpush1.msra.mxu0 0.0
        %685 = vmatprep.subr.mxu0 0.0
        %686 = vmatpush1.msra.mxu0 0.0
        %687 = vmatprep.subr.mxu0 0.0
        %688 = vmatpush1.msra.mxu0 0.0
        %689 = vmatprep.subr.mxu0 0.0
        %690 = vmatpush1.msra.mxu0 0.0
        %691 = vmatprep.subr.mxu0 0.0
        %692 = vmatpush1.msra.mxu0 0.0
        %693 = vmatprep.subr.mxu0 0.0
        %694 = vmatpush1.msra.mxu0 0.0
        %695 = vmatprep.subr.mxu0 0.0
        %696 = vmatpush1.msra.mxu0 0.0
        %697 = vmatprep.subr.mxu0 0.0
        %698 = vmatpush1.msra.mxu0 0.0
        %699 = vmatprep.subr.mxu0 0.0
        %700 = vmatpush1.msra.mxu0 0.0
        %701 = vmatprep.subr.mxu0 0.0
        %702 = vmatpush1.msra.mxu0 0.0
        %703 = vmatprep.subr.mxu0 0.0
        %704 = vmatpush1.msra.mxu0 0.0
        %705 = vmatprep.subr.mxu0 0.0
        %706 = vmatpush1.msra.mxu0 0.0
        %707 = vmatprep.subr.mxu0 0.0
        %708 = vmatpush1.msra.mxu0 0.0
        %709 = vmatprep.subr.mxu0 0.0
        %710 = vmatpush1.msra.mxu0 0.0
        %711 = vmatprep.subr.mxu0 0.0
        %712 = vmatpush1.msra.mxu0 0.0
        %713 = vmatprep.subr.mxu0 0.0
        %714 = vmatpush1.msra.mxu0 0.0
        %715 = vmatprep.subr.mxu0 0.0
        %716 = vmatpush1.msra.mxu0 0.0
        %717 = vmatprep.subr.mxu0 0.0
        %718 = vmatpush1.msra.mxu0 0.0
        %719 = vmatprep.subr.mxu0 0.0
        %720 = vmatpush1.msra.mxu0 0.0
        %721 = vmatprep.subr.mxu0 0.0
        %722 = vmatpush1.msra.mxu0 0.0
        %723 = vmatprep.subr.mxu0 0.0
        %724 = vmatpush1.msra.mxu0 0.0
        %725 = vmatprep.subr.mxu0 0.0
        %726 = vmatpush1.msra.mxu0 0.0
        %727 = vmatprep.subr.mxu0 0.0
        %728 = vmatpush1.msra.mxu0 0.0
        %729 = vmatprep.mubr.f32.mxu0 0.0
        %730 = vmatmul.mubr.f32.gmra.mrb[0].mxu0 %v663
        %v731 = vpop.f32.mrb[0].mxu0
        %v732 = vadd.f32 0.0, %v731
        %v733 = vpop.f32.mrb[0].mxu0
        %734 = vdwg.mxu0
        %v735 = vadd.f32 %v653, %v732
        %v736 = vrcp.pop %v657
        %v737 = vmul.f32 %v735, %v736
        %v738 = vld [vmem:[%s3 + $0x20] sm:$0xff]
        %v739 = vld [vmem:[%s3 + $0x28] sm:$0xff]
        %v740 = vld [vmem:[%s3 + $0x30] sm:$0xff]
        %v741 = vld [vmem:[%s3 + $0x38] sm:$0xff]
        %v743 = vsel %vm250, %v737, 0
        %745 = vmatprep.subr.mxu0 0.0
        %746 = vmatpush1.msra.mxu0 %v738
        %747 = vmatprep.subr.mxu0 0.0
        %748 = vmatpush1.msra.mxu0 %v739
        %749 = vmatprep.subr.mxu0 0.0
        %750 = vmatpush1.msra.mxu0 %v740
        %751 = vmatprep.subr.mxu0 0.0
        %752 = vmatpush1.msra.mxu0 %v741
        %753 = vmatprep.subr.mxu0 0.0
        %754 = vmatpush1.msra.mxu0 0.0
        %755 = vmatprep.subr.mxu0 0.0
        %756 = vmatpush1.msra.mxu0 0.0
        %757 = vmatprep.subr.mxu0 0.0
        %758 = vmatpush1.msra.mxu0 0.0
        %759 = vmatprep.subr.mxu0 0.0
        %760 = vmatpush1.msra.mxu0 0.0
        %761 = vmatprep.subr.mxu0 0.0
        %762 = vmatpush1.msra.mxu0 0.0
        %763 = vmatprep.subr.mxu0 0.0
        %764 = vmatpush1.msra.mxu0 0.0
        %765 = vmatprep.subr.mxu0 0.0
        %766 = vmatpush1.msra.mxu0 0.0
        %767 = vmatprep.subr.mxu0 0.0
        %768 = vmatpush1.msra.mxu0 0.0
        %769 = vmatprep.subr.mxu0 0.0
        %770 = vmatpush1.msra.mxu0 0.0
        %771 = vmatprep.subr.mxu0 0.0
        %772 = vmatpush1.msra.mxu0 0.0
        %773 = vmatprep.subr.mxu0 0.0
        %774 = vmatpush1.msra.mxu0 0.0
        %775 = vmatprep.subr.mxu0 0.0
        %776 = vmatpush1.msra.mxu0 0.0
        %777 = vmatprep.subr.mxu0 0.0
        %778 = vmatpush1.msra.mxu0 0.0
        %779 = vmatprep.subr.mxu0 0.0
        %780 = vmatpush1.msra.mxu0 0.0
        %781 = vmatprep.subr.mxu0 0.0
        %782 = vmatpush1.msra.mxu0 0.0
        %783 = vmatprep.subr.mxu0 0.0
        %784 = vmatpush1.msra.mxu0 0.0
        %785 = vmatprep.subr.mxu0 0.0
        %786 = vmatpush1.msra.mxu0 0.0
        %787 = vmatprep.subr.mxu0 0.0
        %788 = vmatpush1.msra.mxu0 0.0
        %789 = vmatprep.subr.mxu0 0.0
        %790 = vmatpush1.msra.mxu0 0.0
        %791 = vmatprep.subr.mxu0 0.0
        %792 = vmatpush1.msra.mxu0 0.0
        %793 = vmatprep.subr.mxu0 0.0
        %794 = vmatpush1.msra.mxu0 0.0
        %795 = vmatprep.subr.mxu0 0.0
        %796 = vmatpush1.msra.mxu0 0.0
        %797 = vmatprep.subr.mxu0 0.0
        %798 = vmatpush1.msra.mxu0 0.0
        %799 = vmatprep.subr.mxu0 0.0
        %800 = vmatpush1.msra.mxu0 0.0
        %801 = vmatprep.subr.mxu0 0.0
        %802 = vmatpush1.msra.mxu0 0.0
        %803 = vmatprep.subr.mxu0 0.0
        %804 = vmatpush1.msra.mxu0 0.0
        %805 = vmatprep.subr.mxu0 0.0
        %806 = vmatpush1.msra.mxu0 0.0
        %807 = vmatprep.subr.mxu0 0.0
        %808 = vmatpush1.msra.mxu0 0.0
        %809 = vmatprep.mubr.f32.mxu0 0.0
        %810 = vmatmul.mubr.f32.gmra.mrb[0].mxu0 %v743
        %v811 = vpop.f32.mrb[0].mxu0
        %v812 = vadd.f32 0.0, %v811
        %v813 = vpop.f32.mrb[0].mxu0
        %814 = vdwg.mxu0
        %v816 = vsel %vm250, %v561, 0
        %818 = vmatprep.subr.mxu0 0.0
        %819 = vmatpush1.msra.mxu0 %v562
        %820 = vmatprep.subr.mxu0 0.0
        %821 = vmatpush1.msra.mxu0 %v563
        %822 = vmatprep.subr.mxu0 0.0
        %823 = vmatpush1.msra.mxu0 %v564
        %824 = vmatprep.subr.mxu0 0.0
        %825 = vmatpush1.msra.mxu0 %v565
        %826 = vmatprep.subr.mxu0 0.0
        %827 = vmatpush1.msra.mxu0 0.0
        %828 = vmatprep.subr.mxu0 0.0
        %829 = vmatpush1.msra.mxu0 0.0
        %830 = vmatprep.subr.mxu0 0.0
        %831 = vmatpush1.msra.mxu0 0.0
        %832 = vmatprep.subr.mxu0 0.0
        %833 = vmatpush1.msra.mxu0 0.0
        %834 = vmatprep.subr.mxu0 0.0
        %835 = vmatpush1.msra.mxu0 0.0
        %836 = vmatprep.subr.mxu0 0.0
        %837 = vmatpush1.msra.mxu0 0.0
        %838 = vmatprep.subr.mxu0 0.0
        %839 = vmatpush1.msra.mxu0 0.0
        %840 = vmatprep.subr.mxu0 0.0
        %841 = vmatpush1.msra.mxu0 0.0
        %842 = vmatprep.subr.mxu0 0.0
        %843 = vmatpush1.msra.mxu0 0.0
        %844 = vmatprep.subr.mxu0 0.0
        %845 = vmatpush1.msra.mxu0 0.0
        %846 = vmatprep.subr.mxu0 0.0
        %847 = vmatpush1.msra.mxu0 0.0
        %848 = vmatprep.subr.mxu0 0.0
        %849 = vmatpush1.msra.mxu0 0.0
        %850 = vmatprep.subr.mxu0 0.0
        %851 = vmatpush1.msra.mxu0 0.0
        %852 = vmatprep.subr.mxu0 0.0
        %853 = vmatpush1.msra.mxu0 0.0
        %854 = vmatprep.subr.mxu0 0.0
        %855 = vmatpush1.msra.mxu0 0.0
        %856 = vmatprep.subr.mxu0 0.0
        %857 = vmatpush1.msra.mxu0 0.0
        %858 = vmatprep.subr.mxu0 0.0
        %859 = vmatpush1.msra.mxu0 0.0
        %860 = vmatprep.subr.mxu0 0.0
        %861 = vmatpush1.msra.mxu0 0.0
        %862 = vmatprep.subr.mxu0 0.0
        %863 = vmatpush1.msra.mxu0 0.0
        %864 = vmatprep.subr.mxu0 0.0
        %865 = vmatpush1.msra.mxu0 0.0
        %866 = vmatprep.subr.mxu0 0.0
        %867 = vmatpush1.msra.mxu0 0.0
        %868 = vmatprep.subr.mxu0 0.0
        %869 = vmatpush1.msra.mxu0 0.0
        %870 = vmatprep.subr.mxu0 0.0
        %871 = vmatpush1.msra.mxu0 0.0
        %872 = vmatprep.subr.mxu0 0.0
        %873 = vmatpush1.msra.mxu0 0.0
        %874 = vmatprep.subr.mxu0 0.0
        %875 = vmatpush1.msra.mxu0 0.0
        %876 = vmatprep.subr.mxu0 0.0
        %877 = vmatpush1.msra.mxu0 0.0
        %878 = vmatprep.subr.mxu0 0.0
        %879 = vmatpush1.msra.mxu0 0.0
        %880 = vmatprep.subr.mxu0 0.0
        %881 = vmatpush1.msra.mxu0 0.0
        %882 = vmatprep.mubr.f32.mxu0 0.0
        %883 = vmatmul.mubr.f32.gmra.mrb[0].mxu0 %v816
        %v884 = vpop.f32.mrb[0].mxu0
        %v885 = vadd.f32 %v812, %v884
        %v886 = vpop.f32.mrb[0].mxu0
        %887 = vdwg.mxu0
        %888 = vrot.lane.b32.xlu0 %v321, 64
        %v889 = vpop.permute.xlu0 %888
        %890 = vrot.lane.b32.xlu0 %v323, 64
        %v891 = vpop.permute.xlu0 %890
        %v892 = vsel %vm250, %v889, 0
        %v894 = vsel %vm250, %v891, 0
        %896 = vmatprep.subr.mxu0 0.0
        %897 = vmatpush1.xpose.msra.mxu0 %v894
        %898 = vmatprep.subr.mxu0 0.0
        %899 = vmatpush1.xpose.msra.mxu0 0.0
        %900 = vmatprep.subr.mxu0 0.0
        %901 = vmatpush1.xpose.msra.mxu0 0.0
        %902 = vmatprep.subr.mxu0 0.0
        %903 = vmatpush1.xpose.msra.mxu0 0.0
        %904 = vmatprep.subr.mxu0 0.0
        %905 = vmatpush1.xpose.msra.mxu0 0.0
        %906 = vmatprep.subr.mxu0 0.0
        %907 = vmatpush1.xpose.msra.mxu0 0.0
        %908 = vmatprep.subr.mxu0 0.0
        %909 = vmatpush1.xpose.msra.mxu0 0.0
        %910 = vmatprep.subr.mxu0 0.0
        %911 = vmatpush1.xpose.msra.mxu0 0.0
        %912 = vmatprep.subr.mxu0 0.0
        %913 = vmatpush1.xpose.msra.mxu0 0.0
        %914 = vmatprep.subr.mxu0 0.0
        %915 = vmatpush1.xpose.msra.mxu0 0.0
        %916 = vmatprep.subr.mxu0 0.0
        %917 = vmatpush1.xpose.msra.mxu0 0.0
        %918 = vmatprep.subr.mxu0 0.0
        %919 = vmatpush1.xpose.msra.mxu0 0.0
        %920 = vmatprep.subr.mxu0 0.0
        %921 = vmatpush1.xpose.msra.mxu0 0.0
        %922 = vmatprep.subr.mxu0 0.0
        %923 = vmatpush1.xpose.msra.mxu0 0.0
        %924 = vmatprep.subr.mxu0 0.0
        %925 = vmatpush1.xpose.msra.mxu0 0.0
        %926 = vmatprep.subr.mxu0 0.0
        %927 = vmatpush1.xpose.msra.mxu0 0.0
        %928 = vmatprep.subr.mxu0 0.0
        %929 = vmatpush1.xpose.msra.mxu0 0.0
        %930 = vmatprep.subr.mxu0 0.0
        %931 = vmatpush1.xpose.msra.mxu0 0.0
        %932 = vmatprep.subr.mxu0 0.0
        %933 = vmatpush1.xpose.msra.mxu0 0.0
        %934 = vmatprep.subr.mxu0 0.0
        %935 = vmatpush1.xpose.msra.mxu0 0.0
        %936 = vmatprep.subr.mxu0 0.0
        %937 = vmatpush1.xpose.msra.mxu0 0.0
        %938 = vmatprep.subr.mxu0 0.0
        %939 = vmatpush1.xpose.msra.mxu0 0.0
        %940 = vmatprep.subr.mxu0 0.0
        %941 = vmatpush1.xpose.msra.mxu0 0.0
        %942 = vmatprep.subr.mxu0 0.0
        %943 = vmatpush1.xpose.msra.mxu0 0.0
        %944 = vmatprep.subr.mxu0 0.0
        %945 = vmatpush1.xpose.msra.mxu0 0.0
        %946 = vmatprep.subr.mxu0 0.0
        %947 = vmatpush1.xpose.msra.mxu0 0.0
        %948 = vmatprep.subr.mxu0 0.0
        %949 = vmatpush1.xpose.msra.mxu0 0.0
        %950 = vmatprep.subr.mxu0 0.0
        %951 = vmatpush1.xpose.msra.mxu0 0.0
        %952 = vmatprep.subr.mxu0 0.0
        %953 = vmatpush1.xpose.msra.mxu0 0.0
        %954 = vmatprep.subr.mxu0 0.0
        %955 = vmatpush1.xpose.msra.mxu0 0.0
        %956 = vmatprep.subr.mxu0 0.0
        %957 = vmatpush1.xpose.msra.mxu0 0.0
        %958 = vmatprep.subr.mxu0 0.0
        %959 = vmatpush1.xpose.msra.mxu0 0.0
        %960 = vmatprep.mubr.f32.mxu0 0.0
        %961 = vmatmul.mubr.f32.gmra.mrb[0].mxu0 %v892
        %v962 = vpop.f32.mrb[0].mxu0
        %v963 = vadd.f32 0.0, %v962
        %v964 = vpop.f32.mrb[0].mxu0
        %965 = vdwg.mxu0
        %v966 = vsel %vm471, %v963, -inf
        %967 = vmax.xlane.f32.xlu0 %v966
        %v968 = vpop.xlane.xlu0 %967
        %v969 = vsub.f32 -inf, %v968
        %v970 = vmul.f32 %v969, 1.442695
        %v971 = vpow.pop %v970
        %v972 = vsub.f32 %v963, %v968
        %v973 = vmul.f32 %v972, 1.442695
        %v974 = vpow.pop %v973
        %v975 = vmul.f32 %v971, 0.0
        %v976 = vsel %vm471, %v974, 0.0
        %977 = vadd.xlane.f32.xlu0 %v976
        %v978 = vpop.xlane.xlu0 %977
        %v979 = vadd.f32 %v975, %v978
        %980 = vrot.lane.b32.xlu0 %v392, 64
        %v981 = vpop.permute.xlu0 %980
        %v984 = vsel %vm471, %v974, 0
        %986 = vmatprep.subr.mxu0 0.0
        %987 = vmatpush1.msra.mxu0 %v981
        %988 = vmatprep.subr.mxu0 0.0
        %989 = vmatpush1.msra.mxu0 0.0
        %990 = vmatprep.subr.mxu0 0.0
        %991 = vmatpush1.msra.mxu0 0.0
        %992 = vmatprep.subr.mxu0 0.0
        %993 = vmatpush1.msra.mxu0 0.0
        %994 = vmatprep.subr.mxu0 0.0
        %995 = vmatpush1.msra.mxu0 0.0
        %996 = vmatprep.subr.mxu0 0.0
        %997 = vmatpush1.msra.mxu0 0.0
        %998 = vmatprep.subr.mxu0 0.0
        %999 = vmatpush1.msra.mxu0 0.0
        %1000 = vmatprep.subr.mxu0 0.0
        %1001 = vmatpush1.msra.mxu0 0.0
        %1002 = vmatprep.subr.mxu0 0.0
        %1003 = vmatpush1.msra.mxu0 0.0
        %1004 = vmatprep.subr.mxu0 0.0
        %1005 = vmatpush1.msra.mxu0 0.0
        %1006 = vmatprep.subr.mxu0 0.0
        %1007 = vmatpush1.msra.mxu0 0.0
        %1008 = vmatprep.subr.mxu0 0.0
        %1009 = vmatpush1.msra.mxu0 0.0
        %1010 = vmatprep.subr.mxu0 0.0
        %1011 = vmatpush1.msra.mxu0 0.0
        %1012 = vmatprep.subr.mxu0 0.0
        %1013 = vmatpush1.msra.mxu0 0.0
        %1014 = vmatprep.subr.mxu0 0.0
        %1015 = vmatpush1.msra.mxu0 0.0
        %1016 = vmatprep.subr.mxu0 0.0
        %1017 = vmatpush1.msra.mxu0 0.0
        %1018 = vmatprep.subr.mxu0 0.0
        %1019 = vmatpush1.msra.mxu0 0.0
        %1020 = vmatprep.subr.mxu0 0.0
        %1021 = vmatpush1.msra.mxu0 0.0
        %1022 = vmatprep.subr.mxu0 0.0
        %1023 = vmatpush1.msra.mxu0 0.0
        %1024 = vmatprep.subr.mxu0 0.0
        %1025 = vmatpush1.msra.mxu0 0.0
        %1026 = vmatprep.subr.mxu0 0.0
        %1027 = vmatpush1.msra.mxu0 0.0
        %1028 = vmatprep.subr.mxu0 0.0
        %1029 = vmatpush1.msra.mxu0 0.0
        %1030 = vmatprep.subr.mxu0 0.0
        %1031 = vmatpush1.msra.mxu0 0.0
        %1032 = vmatprep.subr.mxu0 0.0
        %1033 = vmatpush1.msra.mxu0 0.0
        %1034 = vmatprep.subr.mxu0 0.0
        %1035 = vmatpush1.msra.mxu0 0.0
        %1036 = vmatprep.subr.mxu0 0.0
        %1037 = vmatpush1.msra.mxu0 0.0
        %1038 = vmatprep.subr.mxu0 0.0
        %1039 = vmatpush1.msra.mxu0 0.0
        %1040 = vmatprep.subr.mxu0 0.0
        %1041 = vmatpush1.msra.mxu0 0.0
        %1042 = vmatprep.subr.mxu0 0.0
        %1043 = vmatpush1.msra.mxu0 0.0
        %1044 = vmatprep.subr.mxu0 0.0
        %1045 = vmatpush1.msra.mxu0 0.0
        %1046 = vmatprep.subr.mxu0 0.0
        %1047 = vmatpush1.msra.mxu0 0.0
        %1048 = vmatprep.subr.mxu0 0.0
        %1049 = vmatpush1.msra.mxu0 0.0
        %1050 = vmatprep.mubr.f32.mxu0 0.0
        %1051 = vmatmul.mubr.f32.gmra.mrb[0].mxu0 %v984
        %v1052 = vpop.f32.mrb[0].mxu0
        %v1053 = vadd.f32 0.0, %v1052
        %v1054 = vpop.f32.mrb[0].mxu0
        %1055 = vdwg.mxu0
        %v1056 = vadd.f32 %v975, %v1053
        %v1057 = vrcp.pop %v979
        %v1058 = vmul.f32 %v1056, %v1057
        %v1059 = vld [vmem:[%s3 + $0x40] sm:$0xff]
        %v1060 = vld [vmem:[%s3 + $0x48] sm:$0xff]
        %v1061 = vld [vmem:[%s3 + $0x50] sm:$0xff]
        %v1062 = vld [vmem:[%s3 + $0x58] sm:$0xff]
        %v1064 = vsel %vm250, %v1058, 0
        %1066 = vmatprep.subr.mxu0 0.0
        %1067 = vmatpush1.msra.mxu0 %v1059
        %1068 = vmatprep.subr.mxu0 0.0
        %1069 = vmatpush1.msra.mxu0 %v1060
        %1070 = vmatprep.subr.mxu0 0.0
        %1071 = vmatpush1.msra.mxu0 %v1061
        %1072 = vmatprep.subr.mxu0 0.0
        %1073 = vmatpush1.msra.mxu0 %v1062
        %1074 = vmatprep.subr.mxu0 0.0
        %1075 = vmatpush1.msra.mxu0 0.0
        %1076 = vmatprep.subr.mxu0 0.0
        %1077 = vmatpush1.msra.mxu0 0.0
        %1078 = vmatprep.subr.mxu0 0.0
        %1079 = vmatpush1.msra.mxu0 0.0
        %1080 = vmatprep.subr.mxu0 0.0
        %1081 = vmatpush1.msra.mxu0 0.0
        %1082 = vmatprep.subr.mxu0 0.0
        %1083 = vmatpush1.msra.mxu0 0.0
        %1084 = vmatprep.subr.mxu0 0.0
        %1085 = vmatpush1.msra.mxu0 0.0
        %1086 = vmatprep.subr.mxu0 0.0
        %1087 = vmatpush1.msra.mxu0 0.0
        %1088 = vmatprep.subr.mxu0 0.0
        %1089 = vmatpush1.msra.mxu0 0.0
        %1090 = vmatprep.subr.mxu0 0.0
        %1091 = vmatpush1.msra.mxu0 0.0
        %1092 = vmatprep.subr.mxu0 0.0
        %1093 = vmatpush1.msra.mxu0 0.0
        %1094 = vmatprep.subr.mxu0 0.0
        %1095 = vmatpush1.msra.mxu0 0.0
        %1096 = vmatprep.subr.mxu0 0.0
        %1097 = vmatpush1.msra.mxu0 0.0
        %1098 = vmatprep.subr.mxu0 0.0
        %1099 = vmatpush1.msra.mxu0 0.0
        %1100 = vmatprep.subr.mxu0 0.0
        %1101 = vmatpush1.msra.mxu0 0.0
        %1102 = vmatprep.subr.mxu0 0.0
        %1103 = vmatpush1.msra.mxu0 0.0
        %1104 = vmatprep.subr.mxu0 0.0
        %1105 = vmatpush1.msra.mxu0 0.0
        %1106 = vmatprep.subr.mxu0 0.0
        %1107 = vmatpush1.msra.mxu0 0.0
        %1108 = vmatprep.subr.mxu0 0.0
        %1109 = vmatpush1.msra.mxu0 0.0
        %1110 = vmatprep.subr.mxu0 0.0
        %1111 = vmatpush1.msra.mxu0 0.0
        %1112 = vmatprep.subr.mxu0 0.0
        %1113 = vmatpush1.msra.mxu0 0.0
        %1114 = vmatprep.subr.mxu0 0.0
        %1115 = vmatpush1.msra.mxu0 0.0
        %1116 = vmatprep.subr.mxu0 0.0
        %1117 = vmatpush1.msra.mxu0 0.0
        %1118 = vmatprep.subr.mxu0 0.0
        %1119 = vmatpush1.msra.mxu0 0.0
        %1120 = vmatprep.subr.mxu0 0.0
        %1121 = vmatpush1.msra.mxu0 0.0
        %1122 = vmatprep.subr.mxu0 0.0
        %1123 = vmatpush1.msra.mxu0 0.0
        %1124 = vmatprep.subr.mxu0 0.0
        %1125 = vmatpush1.msra.mxu0 0.0
        %1126 = vmatprep.subr.mxu0 0.0
        %1127 = vmatpush1.msra.mxu0 0.0
        %1128 = vmatprep.subr.mxu0 0.0
        %1129 = vmatpush1.msra.mxu0 0.0
        %1130 = vmatprep.mubr.f32.mxu0 0.0
        %1131 = vmatmul.mubr.f32.gmra.mrb[0].mxu0 %v1064
        %v1132 = vpop.f32.mrb[0].mxu0
        %v1133 = vadd.f32 0.0, %v1132
        %v1134 = vpop.f32.mrb[0].mxu0
        %1135 = vdwg.mxu0
        %v1136 = vadd.f32 %v885, %v1133
        %1137 = vrot.lane.b32.xlu0 %v321, 32
        %v1138 = vpop.permute.xlu0 %1137
        %1139 = vrot.lane.b32.xlu0 %v323, 32
        %v1140 = vpop.permute.xlu0 %1139
        %v1141 = vsel %vm250, %v1138, 0
        %v1143 = vsel %vm250, %v1140, 0
        %1145 = vmatprep.subr.mxu0 0.0
        %1146 = vmatpush1.xpose.msra.mxu0 %v1143
        %1147 = vmatprep.subr.mxu0 0.0
        %1148 = vmatpush1.xpose.msra.mxu0 0.0
        %1149 = vmatprep.subr.mxu0 0.0
        %1150 = vmatpush1.xpose.msra.mxu0 0.0
        %1151 = vmatprep.subr.mxu0 0.0
        %1152 = vmatpush1.xpose.msra.mxu0 0.0
        %1153 = vmatprep.subr.mxu0 0.0
        %1154 = vmatpush1.xpose.msra.mxu0 0.0
        %1155 = vmatprep.subr.mxu0 0.0
        %1156 = vmatpush1.xpose.msra.mxu0 0.0
        %1157 = vmatprep.subr.mxu0 0.0
        %1158 = vmatpush1.xpose.msra.mxu0 0.0
        %1159 = vmatprep.subr.mxu0 0.0
        %1160 = vmatpush1.xpose.msra.mxu0 0.0
        %1161 = vmatprep.subr.mxu0 0.0
        %1162 = vmatpush1.xpose.msra.mxu0 0.0
        %1163 = vmatprep.subr.mxu0 0.0
        %1164 = vmatpush1.xpose.msra.mxu0 0.0
        %1165 = vmatprep.subr.mxu0 0.0
        %1166 = vmatpush1.xpose.msra.mxu0 0.0
        %1167 = vmatprep.subr.mxu0 0.0
        %1168 = vmatpush1.xpose.msra.mxu0 0.0
        %1169 = vmatprep.subr.mxu0 0.0
        %1170 = vmatpush1.xpose.msra.mxu0 0.0
        %1171 = vmatprep.subr.mxu0 0.0
        %1172 = vmatpush1.xpose.msra.mxu0 0.0
        %1173 = vmatprep.subr.mxu0 0.0
        %1174 = vmatpush1.xpose.msra.mxu0 0.0
        %1175 = vmatprep.subr.mxu0 0.0
        %1176 = vmatpush1.xpose.msra.mxu0 0.0
        %1177 = vmatprep.subr.mxu0 0.0
        %1178 = vmatpush1.xpose.msra.mxu0 0.0
        %1179 = vmatprep.subr.mxu0 0.0
        %1180 = vmatpush1.xpose.msra.mxu0 0.0
        %1181 = vmatprep.subr.mxu0 0.0
        %1182 = vmatpush1.xpose.msra.mxu0 0.0
        %1183 = vmatprep.subr.mxu0 0.0
        %1184 = vmatpush1.xpose.msra.mxu0 0.0
        %1185 = vmatprep.subr.mxu0 0.0
        %1186 = vmatpush1.xpose.msra.mxu0 0.0
        %1187 = vmatprep.subr.mxu0 0.0
        %1188 = vmatpush1.xpose.msra.mxu0 0.0
        %1189 = vmatprep.subr.mxu0 0.0
        %1190 = vmatpush1.xpose.msra.mxu0 0.0
        %1191 = vmatprep.subr.mxu0 0.0
        %1192 = vmatpush1.xpose.msra.mxu0 0.0
        %1193 = vmatprep.subr.mxu0 0.0
        %1194 = vmatpush1.xpose.msra.mxu0 0.0
        %1195 = vmatprep.subr.mxu0 0.0
        %1196 = vmatpush1.xpose.msra.mxu0 0.0
        %1197 = vmatprep.subr.mxu0 0.0
        %1198 = vmatpush1.xpose.msra.mxu0 0.0
        %1199 = vmatprep.subr.mxu0 0.0
        %1200 = vmatpush1.xpose.msra.mxu0 0.0
        %1201 = vmatprep.subr.mxu0 0.0
        %1202 = vmatpush1.xpose.msra.mxu0 0.0
        %1203 = vmatprep.subr.mxu0 0.0
        %1204 = vmatpush1.xpose.msra.mxu0 0.0
        %1205 = vmatprep.subr.mxu0 0.0
        %1206 = vmatpush1.xpose.msra.mxu0 0.0
        %1207 = vmatprep.subr.mxu0 0.0
        %1208 = vmatpush1.xpose.msra.mxu0 0.0
        %1209 = vmatprep.mubr.f32.mxu0 0.0
        %1210 = vmatmul.mubr.f32.gmra.mrb[0].mxu0 %v1141
        %v1211 = vpop.f32.mrb[0].mxu0
        %v1212 = vadd.f32 0.0, %v1211
        %v1213 = vpop.f32.mrb[0].mxu0
        %1214 = vdwg.mxu0
        %v1215 = vsel %vm471, %v1212, -inf
        %1216 = vmax.xlane.f32.xlu0 %v1215
        %v1217 = vpop.xlane.xlu0 %1216
        %v1218 = vsub.f32 -inf, %v1217
        %v1219 = vmul.f32 %v1218, 1.442695
        %v1220 = vpow.pop %v1219
        %v1221 = vsub.f32 %v1212, %v1217
        %v1222 = vmul.f32 %v1221, 1.442695
        %v1223 = vpow.pop %v1222
        %v1224 = vmul.f32 %v1220, 0.0
        %v1225 = vsel %vm471, %v1223, 0.0
        %1226 = vadd.xlane.f32.xlu0 %v1225
        %v1227 = vpop.xlane.xlu0 %1226
        %v1228 = vadd.f32 %v1224, %v1227
        %1229 = vrot.lane.b32.xlu0 %v392, 32
        %v1230 = vpop.permute.xlu0 %1229
        %v1233 = vsel %vm471, %v1223, 0
        %1235 = vmatprep.subr.mxu0 0.0
        %1236 = vmatpush1.msra.mxu0 %v1230
        %1237 = vmatprep.subr.mxu0 0.0
        %1238 = vmatpush1.msra.mxu0 0.0
        %1239 = vmatprep.subr.mxu0 0.0
        %1240 = vmatpush1.msra.mxu0 0.0
        %1241 = vmatprep.subr.mxu0 0.0
        %1242 = vmatpush1.msra.mxu0 0.0
        %1243 = vmatprep.subr.mxu0 0.0
        %1244 = vmatpush1.msra.mxu0 0.0
        %1245 = vmatprep.subr.mxu0 0.0
        %1246 = vmatpush1.msra.mxu0 0.0
        %1247 = vmatprep.subr.mxu0 0.0
        %1248 = vmatpush1.msra.mxu0 0.0
        %1249 = vmatprep.subr.mxu0 0.0
        %1250 = vmatpush1.msra.mxu0 0.0
        %1251 = vmatprep.subr.mxu0 0.0
        %1252 = vmatpush1.msra.mxu0 0.0
        %1253 = vmatprep.subr.mxu0 0.0
        %1254 = vmatpush1.msra.mxu0 0.0
        %1255 = vmatprep.subr.mxu0 0.0
        %1256 = vmatpush1.msra.mxu0 0.0
        %1257 = vmatprep.subr.mxu0 0.0
        %1258 = vmatpush1.msra.mxu0 0.0
        %1259 = vmatprep.subr.mxu0 0.0
        %1260 = vmatpush1.msra.mxu0 0.0
        %1261 = vmatprep.subr.mxu0 0.0
        %1262 = vmatpush1.msra.mxu0 0.0
        %1263 = vmatprep.subr.mxu0 0.0
        %1264 = vmatpush1.msra.mxu0 0.0
        %1265 = vmatprep.subr.mxu0 0.0
        %1266 = vmatpush1.msra.mxu0 0.0
        %1267 = vmatprep.subr.mxu0 0.0
        %1268 = vmatpush1.msra.mxu0 0.0
        %1269 = vmatprep.subr.mxu0 0.0
        %1270 = vmatpush1.msra.mxu0 0.0
        %1271 = vmatprep.subr.mxu0 0.0
        %1272 = vmatpush1.msra.mxu0 0.0
        %1273 = vmatprep.subr.mxu0 0.0
        %1274 = vmatpush1.msra.mxu0 0.0
        %1275 = vmatprep.subr.mxu0 0.0
        %1276 = vmatpush1.msra.mxu0 0.0
        %1277 = vmatprep.subr.mxu0 0.0
        %1278 = vmatpush1.msra.mxu0 0.0
        %1279 = vmatprep.subr.mxu0 0.0
        %1280 = vmatpush1.msra.mxu0 0.0
        %1281 = vmatprep.subr.mxu0 0.0
        %1282 = vmatpush1.msra.mxu0 0.0
        %1283 = vmatprep.subr.mxu0 0.0
        %1284 = vmatpush1.msra.mxu0 0.0
        %1285 = vmatprep.subr.mxu0 0.0
        %1286 = vmatpush1.msra.mxu0 0.0
        %1287 = vmatprep.subr.mxu0 0.0
        %1288 = vmatpush1.msra.mxu0 0.0
        %1289 = vmatprep.subr.mxu0 0.0
        %1290 = vmatpush1.msra.mxu0 0.0
        %1291 = vmatprep.subr.mxu0 0.0
        %1292 = vmatpush1.msra.mxu0 0.0
        %1293 = vmatprep.subr.mxu0 0.0
        %1294 = vmatpush1.msra.mxu0 0.0
        %1295 = vmatprep.subr.mxu0 0.0
        %1296 = vmatpush1.msra.mxu0 0.0
        %1297 = vmatprep.subr.mxu0 0.0
        %1298 = vmatpush1.msra.mxu0 0.0
        %1299 = vmatprep.mubr.f32.mxu0 0.0
        %1300 = vmatmul.mubr.f32.gmra.mrb[0].mxu0 %v1233
        %v1301 = vpop.f32.mrb[0].mxu0
        %v1302 = vadd.f32 0.0, %v1301
        %v1303 = vpop.f32.mrb[0].mxu0
        %1304 = vdwg.mxu0
        %v1305 = vadd.f32 %v1224, %v1302
        %v1306 = vrcp.pop %v1228
        %v1307 = vmul.f32 %v1305, %v1306
        %v1308 = vld [vmem:[%s3 + $0x60] sm:$0xff]
        %v1309 = vld [vmem:[%s3 + $0x68] sm:$0xff]
        %v1310 = vld [vmem:[%s3 + $0x70] sm:$0xff]
        %v1311 = vld [vmem:[%s3 + $0x78] sm:$0xff]
        %v1313 = vsel %vm250, %v1307, 0
        %1315 = vmatprep.subr.mxu0 0.0
        %1316 = vmatpush1.msra.mxu0 %v1308
        %1317 = vmatprep.subr.mxu0 0.0
        %1318 = vmatpush1.msra.mxu0 %v1309
        %1319 = vmatprep.subr.mxu0 0.0
        %1320 = vmatpush1.msra.mxu0 %v1310
        %1321 = vmatprep.subr.mxu0 0.0
        %1322 = vmatpush1.msra.mxu0 %v1311
        %1323 = vmatprep.subr.mxu0 0.0
        %1324 = vmatpush1.msra.mxu0 0.0
        %1325 = vmatprep.subr.mxu0 0.0
        %1326 = vmatpush1.msra.mxu0 0.0
        %1327 = vmatprep.subr.mxu0 0.0
        %1328 = vmatpush1.msra.mxu0 0.0
        %1329 = vmatprep.subr.mxu0 0.0
        %1330 = vmatpush1.msra.mxu0 0.0
        %1331 = vmatprep.subr.mxu0 0.0
        %1332 = vmatpush1.msra.mxu0 0.0
        %1333 = vmatprep.subr.mxu0 0.0
        %1334 = vmatpush1.msra.mxu0 0.0
        %1335 = vmatprep.subr.mxu0 0.0
        %1336 = vmatpush1.msra.mxu0 0.0
        %1337 = vmatprep.subr.mxu0 0.0
        %1338 = vmatpush1.msra.mxu0 0.0
        %1339 = vmatprep.subr.mxu0 0.0
        %1340 = vmatpush1.msra.mxu0 0.0
        %1341 = vmatprep.subr.mxu0 0.0
        %1342 = vmatpush1.msra.mxu0 0.0
        %1343 = vmatprep.subr.mxu0 0.0
        %1344 = vmatpush1.msra.mxu0 0.0
        %1345 = vmatprep.subr.mxu0 0.0
        %1346 = vmatpush1.msra.mxu0 0.0
        %1347 = vmatprep.subr.mxu0 0.0
        %1348 = vmatpush1.msra.mxu0 0.0
        %1349 = vmatprep.subr.mxu0 0.0
        %1350 = vmatpush1.msra.mxu0 0.0
        %1351 = vmatprep.subr.mxu0 0.0
        %1352 = vmatpush1.msra.mxu0 0.0
        %1353 = vmatprep.subr.mxu0 0.0
        %1354 = vmatpush1.msra.mxu0 0.0
        %1355 = vmatprep.subr.mxu0 0.0
        %1356 = vmatpush1.msra.mxu0 0.0
        %1357 = vmatprep.subr.mxu0 0.0
        %1358 = vmatpush1.msra.mxu0 0.0
        %1359 = vmatprep.subr.mxu0 0.0
        %1360 = vmatpush1.msra.mxu0 0.0
        %1361 = vmatprep.subr.mxu0 0.0
        %1362 = vmatpush1.msra.mxu0 0.0
        %1363 = vmatprep.subr.mxu0 0.0
        %1364 = vmatpush1.msra.mxu0 0.0
        %1365 = vmatprep.subr.mxu0 0.0
        %1366 = vmatpush1.msra.mxu0 0.0
        %1367 = vmatprep.subr.mxu0 0.0
        %1368 = vmatpush1.msra.mxu0 0.0
        %1369 = vmatprep.subr.mxu0 0.0
        %1370 = vmatpush1.msra.mxu0 0.0
        %1371 = vmatprep.subr.mxu0 0.0
        %1372 = vmatpush1.msra.mxu0 0.0
        %1373 = vmatprep.subr.mxu0 0.0
        %1374 = vmatpush1.msra.mxu0 0.0
        %1375 = vmatprep.subr.mxu0 0.0
        %1376 = vmatpush1.msra.mxu0 0.0
        %1377 = vmatprep.subr.mxu0 0.0
        %1378 = vmatpush1.msra.mxu0 0.0
        %1379 = vmatprep.mubr.f32.mxu0 0.0
        %1380 = vmatmul.mubr.f32.gmra.mrb[0].mxu0 %v1313
        %v1381 = vpop.f32.mrb[0].mxu0
        %v1382 = vadd.f32 0.0, %v1381
        %v1383 = vpop.f32.mrb[0].mxu0
        %1384 = vdwg.mxu0
        %v1385 = vadd.f32 %v1136, %v1382
        %v1386 = vld [vmem:[%s4] sm:$0x1]
        %v1388 = vlaneseq
        %v1389 = vshrl.u32 %v1388, 7
        %v1390 = vsub.s32 0, %v1389
        %v1391 = vrot.slane %v1386, %v1390
        %v1393 = vadd.f32 %v1385, %v1391
        %1394 = vst.msk [vmem:[%s215] sm:$0xff] %vm250, %v1393
        %s1395 = sand.u32 %s137, 1
        %s1396 = scalar_lea.sflag [#allocation3], %s1395
        %s1397 = sand.u32 %s137, 1
        %s1398 = smul.addr %s1397, 8
        %s1399 = scalar_lea.vmem [#allocation2], %s1398
        // Predicated region
        $region41: #{tpu_custom_call.1} parent=39 // pred_check
          %p1400 = pneg %p147
        $region42: #{tpu_custom_call.1} parent=39 // pred_check_branch
          %1402 = sbr.rel (%p1400) target = $region44
        $region43: #{tpu_custom_call.1} parent=39 // pred_region
          %s1404 = ssub.s32 128, 128
          %1405 = vsyncadd %s1396, %s1404
          %s1406 = smul.addr %s19, 128
          %s1407 = scalar_lea.hbm %s5, %s1406
          %s1409 = sshll.u32 %s1399, 4
          %s1410 = int_to_ptr.vmem [resolvable:$true] %s1409
          %1412 = dma.vmem_to_hbm [thread:$0]  %s1410, 128, %s1407, %s1396
        $region44: #{tpu_custom_call.1} parent=39 // pred_fallthru
          _
      $region40: #{tpu_custom_call.1} parent=5 // pred_fallthru
        _
      %p1413 = scmp.le.s32.totalorder 2, %s14
      // Predicated region
      $region45: #{tpu_custom_call.1} parent=5 // pred_check
        %p1414 = pneg %p1413
      $region46: #{tpu_custom_call.1} parent=5 // pred_check_branch
        %1416 = sbr.rel (%p1414) target = $region48
      $region47: #{tpu_custom_call.1} parent=5 // pred_region
        %s1417 = ssub.s32 %s14, 2
        // Predicated region
        $region49: #{tpu_custom_call.1} parent=47 // pred_check
          %p1418 = pneg %p153
        $region50: #{tpu_custom_call.1} parent=47 // pred_check_branch
          %1420 = sbr.rel (%p1418) target = $region52
        $region51: #{tpu_custom_call.1} parent=47 // pred_region
          %s1421 = sand.u32 %s138, 1
          %s1422 = scalar_lea.sflag [#allocation3], %s1421
          %s1423 = sand.u32 %s138, 1
          %s1424 = smul.addr %s1423, 8
          %s1425 = scalar_lea.vmem [#allocation2], %s1424
          %1426 = dma.done %s1422, 128
        $region52: #{tpu_custom_call.1} parent=47 // pred_fallthru
          _
      $region48: #{tpu_custom_call.1} parent=5 // pred_fallthru
        _
    $region6: #{tpu_custom_call.1} parent=1 // loop_footer
      %s18 = sadd.s32 1, %s14
    $region7: #{tpu_custom_call.1} parent=1 // loop_footer_branch
      %13 = sbr.rel target = $region3
    $region8: #{tpu_custom_call.1} parent=1 // loop_exit
      _
    %1427 = vsyncpa [#allocation3], 1
    %s1428 = scalar_lea.sflag [#allocation3], 1
    %1429 = vsyncpa %s1428, 1

</llo_original>
